<compile_context>
chip_gen: v5e
topology: v5e:2x2
jax: 0.10.0
libtpu: 0.0.40
codegen_flags: <defaults>
</compile_context>

<pallas_src>
import functools

import jax
import jax.numpy as jnp
from jax import lax
from jax.experimental import pallas as pl
from jax.experimental.pallas import tpu as pltpu

INPUT = 512            # LSTM input size
HIDDEN = 64            # LSTM hidden size (per direction)
OUT = 6                # num_classes
OUT_PAD = 128          # lane-dense padded head width
GATES = 4 * HIDDEN     # 256 gate columns per direction
NDIR_GATES = 2 * GATES # 512 gate columns (both directions)


def _sigmoid(v):
    return 1.0 / (1.0 + jnp.exp(-v))


def _round_up(n, m):
    return ((n + m - 1) // m) * m


def lstm_mlp_kernel(x_ref, wx_ref, bx_ref, whf_ref, whr_ref,
                    w1_ref, b1_ref, w2_ref, b2_ref,
                    o_ref, xgf_ref, xgb_ref, hfwd_ref, hbwd_ref):
    T, TB = x_ref.shape[0], x_ref.shape[1]

    # ---- 1) Input projections for BOTH LSTM directions: one big MXU matmul ----
    x2d = x_ref[...].reshape(T * TB, INPUT)                              # bf16
    xg = jnp.dot(x2d, wx_ref[...], preferred_element_type=jnp.float32)
    xg = xg + bx_ref[...]                                                # (T*TB, 512) f32
    xgf_ref[...] = xg[:, :GATES].reshape(T, TB, GATES)
    xgb_ref[...] = xg[:, GATES:].reshape(T, TB, GATES)

    zero = jnp.zeros((TB, HIDDEN), jnp.float32)

    # ---- 2) Forward-direction recurrence (PyTorch gate order: i, f, g, o) ----
    whf = whf_ref[...]                                                   # (64, 256) bf16

    def fwd_step(t, carry):
        h, c = carry
        z = xgf_ref[t] + jnp.dot(h.astype(jnp.bfloat16), whf,
                                 preferred_element_type=jnp.float32)
        i_g = _sigmoid(z[:, 0:HIDDEN])
        f_g = _sigmoid(z[:, HIDDEN:2 * HIDDEN])
        g_g = jnp.tanh(z[:, 2 * HIDDEN:3 * HIDDEN])
        o_g = _sigmoid(z[:, 3 * HIDDEN:4 * HIDDEN])
        c = f_g * c + i_g * g_g
        h = o_g * jnp.tanh(c)
        hfwd_ref[t] = h
        return h, c

    lax.fori_loop(0, T, fwd_step, (zero, zero))

    # ---- 3) Backward-direction recurrence ----
    whr = whr_ref[...]

    def bwd_step(s, carry):
        t = T - 1 - s
        h, c = carry
        z = xgb_ref[t] + jnp.dot(h.astype(jnp.bfloat16), whr,
                                 preferred_element_type=jnp.float32)
        i_g = _sigmoid(z[:, 0:HIDDEN])
        f_g = _sigmoid(z[:, HIDDEN:2 * HIDDEN])
        g_g = jnp.tanh(z[:, 2 * HIDDEN:3 * HIDDEN])
        o_g = _sigmoid(z[:, 3 * HIDDEN:4 * HIDDEN])
        c = f_g * c + i_g * g_g
        h = o_g * jnp.tanh(c)
        hbwd_ref[t] = h
        return h, c

    lax.fori_loop(0, T, bwd_step, (zero, zero))

    # ---- 4) Head: fc1 + ReLU (+ dropout = identity in eval) + fc2 (lane-padded) ----
    # TODO(synk): dropout implemented as identity (inference/eval); training-mode
    # dropout would use pltpu.prng_seed / pltpu.prng_random_bits masking.
    hf = hfwd_ref[...].reshape(T * TB, HIDDEN).astype(jnp.bfloat16)
    hb = hbwd_ref[...].reshape(T * TB, HIDDEN).astype(jnp.bfloat16)
    # fc1(concat(hf, hb)) == hf @ W1[:H] + hb @ W1[H:]  (avoids an in-kernel concat)
    h1 = jnp.dot(hf, w1_ref[0:HIDDEN, :], preferred_element_type=jnp.float32)
    h1 = h1 + jnp.dot(hb, w1_ref[HIDDEN:2 * HIDDEN, :],
                      preferred_element_type=jnp.float32)
    h1 = jnp.maximum(h1 + b1_ref[...], 0.0)
    y = jnp.dot(h1.astype(jnp.bfloat16), w2_ref[...],
                preferred_element_type=jnp.float32)
    y = y + b2_ref[...]
    o_ref[...] = y.reshape(T, TB, OUT_PAD).astype(o_ref.dtype)


def _cost_estimate(b_pad, T):
    flops = (
        2 * T * b_pad * INPUT * NDIR_GATES          # fused input projection
        + 2 * T * b_pad * HIDDEN * GATES * 2        # recurrent matmuls (both dirs)
        + 2 * T * b_pad * HIDDEN * OUT_PAD * 2      # fc1 (two half matmuls)
        + 2 * T * b_pad * OUT_PAD * OUT_PAD         # fc2 (padded)
    )
    transcendentals = b_pad * T * 2 * 5 * HIDDEN    # 3 sigmoid + 2 tanh per dir
    bytes_accessed = (
        T * b_pad * INPUT * 2                       # x (bf16)
        + T * b_pad * OUT_PAD * 4                   # padded output (f32)
        + (INPUT * NDIR_GATES + 2 * HIDDEN * GATES + 2 * OUT_PAD * OUT_PAD) * 2
        + (NDIR_GATES + 2 * OUT_PAD) * 4            # f32 biases
    )
    return pl.CostEstimate(flops=int(flops), transcendentals=int(transcendentals),
                           bytes_accessed=int(bytes_accessed))


def model4_forward(x, params, *, block_b=32):
    """x: (B, T, 512) float32. Returns (B, T, 6) float32 (eval-mode forward)."""
    wx, bx, whf, whr, w1p, b1p, w2p, b2p = params
    B, T, _ = x.shape

    # Batch tile: multiple of 16 (bf16 sublane packing); capped so the double-buffered
    # (T, TB, *) working set stays inside default scoped VMEM on v5e/v6e/v7x.
    tb = _round_up(min(_round_up(B, 16), block_b), 16)
    b_pad = _round_up(B, tb)

    xt = jnp.transpose(x, (1, 0, 2)).astype(jnp.bfloat16)      # (T, B, 512) bf16
    if b_pad != B:
        xt = jnp.pad(xt, ((0, 0), (0, b_pad - B), (0, 0)))

    out = pl.pallas_call(
        lstm_mlp_kernel,
        out_shape=jax.ShapeDtypeStruct((T, b_pad, OUT_PAD), jnp.float32),
        grid_spec=pltpu.PrefetchScalarGridSpec(
            num_scalar_prefetch=0,
            grid=(b_pad // tb,),
            in_specs=[
                pl.BlockSpec((T, tb, INPUT), lambda i: (0, i, 0)),      # x batch tile
                pl.BlockSpec((INPUT, NDIR_GATES), lambda i: (0, 0)),    # Wx   (resident)
                pl.BlockSpec((1, NDIR_GATES), lambda i: (0, 0)),        # bias (resident)
                pl.BlockSpec((HIDDEN, GATES), lambda i: (0, 0)),        # Whh fwd
                pl.BlockSpec((HIDDEN, GATES), lambda i: (0, 0)),        # Whh rev
                pl.BlockSpec((2 * HIDDEN, OUT_PAD), lambda i: (0, 0)),  # fc1 W (padded)
                pl.BlockSpec((1, OUT_PAD), lambda i: (0, 0)),           # fc1 b (padded)
                pl.BlockSpec((OUT_PAD, OUT_PAD), lambda i: (0, 0)),     # fc2 W (padded)
                pl.BlockSpec((1, OUT_PAD), lambda i: (0, 0)),           # fc2 b (padded)
            ],
            out_specs=pl.BlockSpec((T, tb, OUT_PAD), lambda i: (0, i, 0)),
            scratch_shapes=[
                pltpu.VMEM((T, tb, GATES), jnp.float32),    # fwd gate pre-activations
                pltpu.VMEM((T, tb, GATES), jnp.float32),    # bwd gate pre-activations
                pltpu.VMEM((T, tb, HIDDEN), jnp.float32),   # fwd hidden sequence
                pltpu.VMEM((T, tb, HIDDEN), jnp.float32),   # bwd hidden sequence
            ],
        ),
        compiler_params=pltpu.CompilerParams(
            dimension_semantics=("parallel",),   # shard batch tiles across TCs on v7x
        ),
        cost_estimate=_cost_estimate(b_pad, T),
    )(xt, wx, bx, whf, whr, w1p, b1p, w2p, b2p)

    return jnp.transpose(out[:, :B, :OUT], (1, 0, 2))


# ---------------- parameter init (mimics PyTorch defaults) & layout prep ----------------
def init_torch_like_params(key):
    ks = jax.random.split(key, 12)
    bl = 1.0 / jnp.sqrt(HIDDEN)          # LSTM init bound
    b1 = 1.0 / jnp.sqrt(2 * HIDDEN)      # fc1 fan_in = 128
    b2 = 1.0 / jnp.sqrt(HIDDEN)          # fc2 fan_in = 64

    def u(k, shape, bound):
        return jax.random.uniform(k, shape, jnp.float32, minval=-bound, maxval=bound)

    return dict(
        w_ih_f=u(ks[0], (GATES, INPUT), bl), w_hh_f=u(ks[1], (GATES, HIDDEN), bl),
        b_ih_f=u(ks[2], (GATES,), bl),       b_hh_f=u(ks[3], (GATES,), bl),
        w_ih_r=u(ks[4], (GATES, INPUT), bl), w_hh_r=u(ks[5], (GATES, HIDDEN), bl),
        b_ih_r=u(ks[6], (GATES,), bl),       b_hh_r=u(ks[7], (GATES,), bl),
        w_fc1=u(ks[8], (HIDDEN, 2 * HIDDEN), b1), b_fc1=u(ks[9], (HIDDEN,), b1),
        w_fc2=u(ks[10], (OUT, HIDDEN), b2),       b_fc2=u(ks[11], (OUT,), b2),
    )


def prepare_kernel_params(p):
    wx = jnp.concatenate([p['w_ih_f'].T, p['w_ih_r'].T], axis=1).astype(jnp.bfloat16)
    bx = jnp.concatenate([p['b_ih_f'] + p['b_hh_f'],
                          p['b_ih_r'] + p['b_hh_r']])[None, :]                 # (1,512) f32
    whf = p['w_hh_f'].T.astype(jnp.bfloat16)                                   # (64,256)
    whr = p['w_hh_r'].T.astype(jnp.bfloat16)
    w1p = jnp.zeros((2 * HIDDEN, OUT_PAD), jnp.float32).at[:, :HIDDEN].set(
        p['w_fc1'].T).astype(jnp.bfloat16)                                     # (128,128)
    b1p = jnp.zeros((1, OUT_PAD), jnp.float32).at[0, :HIDDEN].set(p['b_fc1'])
    w2p = jnp.zeros((OUT_PAD, OUT_PAD), jnp.float32).at[:HIDDEN, :OUT].set(
        p['w_fc2'].T).astype(jnp.bfloat16)                                     # (128,128)
    b2p = jnp.zeros((1, OUT_PAD), jnp.float32).at[0, :OUT].set(p['b_fc2'])
    return wx, bx, whf, whr, w1p, b1p, w2p, b2p


# ---------------- pure-JAX reference (same bf16-operand / f32-accum math) ----------------
def reference_forward(x, kparams):
    wx, bx, whf, whr, w1p, b1p, w2p, b2p = kparams
    B, T, _ = x.shape
    xb = x.astype(jnp.bfloat16)
    xg = jnp.einsum('bti,ij->btj', xb, wx, preferred_element_type=jnp.float32) + bx
    xgf, xgb = xg[..., :GATES], xg[..., GATES:]

    def cell(z, h, c, whh):
        z = z + jnp.dot(h.astype(jnp.bfloat16), whh, preferred_element_type=jnp.float32)
        i_g = _sigmoid(z[:, 0:HIDDEN])
        f_g = _sigmoid(z[:, HIDDEN:2 * HIDDEN])
        g_g = jnp.tanh(z[:, 2 * HIDDEN:3 * HIDDEN])
        o_g = _sigmoid(z[:, 3 * HIDDEN:4 * HIDDEN])
        c = f_g * c + i_g * g_g
        return o_g * jnp.tanh(c), c

    h = jnp.zeros((B, HIDDEN), jnp.float32); c = jnp.zeros_like(h)
    hf = []
    for t in range(T):
        h, c = cell(xgf[:, t], h, c, whf); hf.append(h)
    h = jnp.zeros((B, HIDDEN), jnp.float32); c = jnp.zeros_like(h)
    hb = [None] * T
    for t in range(T - 1, -1, -1):
        h, c = cell(xgb[:, t], h, c, whr); hb[t] = h
    hcat = jnp.concatenate([jnp.stack(hf, 1), jnp.stack(hb, 1)], axis=-1).astype(jnp.bfloat16)
    h1 = jnp.maximum(jnp.einsum('btk,kj->btj', hcat, w1p,
                                preferred_element_type=jnp.float32) + b1p, 0.0)
    y = jnp.einsum('btk,kj->btj', h1.astype(jnp.bfloat16), w2p,
                   preferred_element_type=jnp.float32) + b2p
    return y[..., :OUT]


if __name__ == "__main__":
    key = jax.random.PRNGKey(0)
    kx, kp = jax.random.split(key)

    B, T = 2, 8
    x = jax.random.normal(kx, (B, T, INPUT), jnp.float32)
    kparams = prepare_kernel_params(init_torch_like_params(kp))

    out = jax.jit(functools.partial(model4_forward, block_b=32))(x, kparams)
    out = jax.block_until_ready(out)

    ref = reference_forward(x, kparams)
    assert out.shape == (B, T, OUT)
    assert jnp.allclose(out, ref, atol=2e-2, rtol=2e-2)

    print("KERNEL_OK")
</pallas_src>

<mosaic_0001>
module attributes {stable_mosaic.version = 11 : i64} {
  func.func @lstm_mlp_kernel(%arg0: i32, %arg1: memref<8x16x512xbf16, #tpu.memory_space<vmem>>, %arg2: memref<512x512xbf16, #tpu.memory_space<vmem>>, %arg3: memref<1x512xf32, #tpu.memory_space<vmem>>, %arg4: memref<64x256xbf16, #tpu.memory_space<vmem>>, %arg5: memref<64x256xbf16, #tpu.memory_space<vmem>>, %arg6: memref<128x128xbf16, #tpu.memory_space<vmem>>, %arg7: memref<1x128xf32, #tpu.memory_space<vmem>>, %arg8: memref<128x128xbf16, #tpu.memory_space<vmem>>, %arg9: memref<1x128xf32, #tpu.memory_space<vmem>>, %arg10: memref<8x16x128xf32, #tpu.memory_space<vmem>>, %arg11: memref<8x16x256xf32, #tpu.memory_space<vmem>>, %arg12: memref<8x16x256xf32, #tpu.memory_space<vmem>>, %arg13: memref<8x16x64xf32, #tpu.memory_space<vmem>>, %arg14: memref<8x16x64xf32, #tpu.memory_space<vmem>>) attributes {dimension_semantics = [#tpu.dimension_semantics<parallel>], iteration_bounds = array<i64: 1>, scalar_prefetch = 0 : i64, scratch_operands = 4 : i64, tpu.core_type = #tpu.core_type<tc>, window_params = [{transform_indices = @transform_0, window_bounds = array<i64: 8, 16, 512>}, {pipeline_mode = #tpu.pipeline_mode<synchronous>, transform_indices = @transform_1, window_bounds = array<i64: 512, 512>}, {pipeline_mode = #tpu.pipeline_mode<synchronous>, transform_indices = @transform_2, window_bounds = array<i64: 1, 512>}, {pipeline_mode = #tpu.pipeline_mode<synchronous>, transform_indices = @transform_3, window_bounds = array<i64: 64, 256>}, {pipeline_mode = #tpu.pipeline_mode<synchronous>, transform_indices = @transform_4, window_bounds = array<i64: 64, 256>}, {pipeline_mode = #tpu.pipeline_mode<synchronous>, transform_indices = @transform_5, window_bounds = array<i64: 128, 128>}, {pipeline_mode = #tpu.pipeline_mode<synchronous>, transform_indices = @transform_6, window_bounds = array<i64: 1, 128>}, {pipeline_mode = #tpu.pipeline_mode<synchronous>, transform_indices = @transform_7, window_bounds = array<i64: 128, 128>}, {pipeline_mode = #tpu.pipeline_mode<synchronous>, transform_indices = @transform_8, window_bounds = array<i64: 1, 128>}, {transform_indices = @transform_9, window_bounds = array<i64: 8, 16, 128>}]} {
    %c0 = arith.constant 0 : index
    %c0_0 = arith.constant 0 : index
    %c0_1 = arith.constant 0 : index
    %0 = vector.load %arg1[%c0, %c0_0, %c0_1] : memref<8x16x512xbf16, #tpu.memory_space<vmem>>, vector<8x16x512xbf16>
    %1 = vector.shape_cast %0 : vector<8x16x512xbf16> to vector<128x512xbf16>
    %c0_2 = arith.constant 0 : index
    %c0_3 = arith.constant 0 : index
    %2 = vector.load %arg2[%c0_2, %c0_3] : memref<512x512xbf16, #tpu.memory_space<vmem>>, vector<512x512xbf16>
    %cst = arith.constant dense<0.000000e+00> : vector<128x512xf32>
    %3 = tpu.matmul %1, %2, %cst {dimension_numbers = #tpu.dot_dimension_numbers<[1], [0], [0], [1], [0, 0, 1, 1], [], []>} : vector<128x512xbf16>, vector<512x512xbf16>, vector<128x512xf32> -> vector<128x512xf32>
    %c0_4 = arith.constant 0 : index
    %c0_5 = arith.constant 0 : index
    %4 = vector.load %arg3[%c0_4, %c0_5] : memref<1x512xf32, #tpu.memory_space<vmem>>, vector<1x512xf32>
    %5 = vector.broadcast %4 : vector<1x512xf32> to vector<128x512xf32>
    %6 = arith.addf %3, %5 : vector<128x512xf32>
    %7 = vector.extract_strided_slice %6 {offsets = [0, 0], sizes = [128, 256], strides = [1, 1]} : vector<128x512xf32> to vector<128x256xf32>
    %8 = vector.shape_cast %7 : vector<128x256xf32> to vector<8x16x256xf32>
    %c0_6 = arith.constant 0 : index
    %c0_7 = arith.constant 0 : index
    %c0_8 = arith.constant 0 : index
    %9 = vector.load %arg11[%c0_6, %c0_7, %c0_8] : memref<8x16x256xf32, #tpu.memory_space<vmem>>, vector<8x16x256xf32>
    tpu.vector_store %arg11[%c0_6, %c0_7, %c0_8], %8 {strides = array<i32>} : memref<8x16x256xf32, #tpu.memory_space<vmem>>, vector<8x16x256xf32>,
    %10 = vector.extract_strided_slice %6 {offsets = [0, 256], sizes = [128, 256], strides = [1, 1]} : vector<128x512xf32> to vector<128x256xf32>
    %11 = vector.shape_cast %10 : vector<128x256xf32> to vector<8x16x256xf32>
    %c0_9 = arith.constant 0 : index
    %c0_10 = arith.constant 0 : index
    %c0_11 = arith.constant 0 : index
    %12 = vector.load %arg12[%c0_9, %c0_10, %c0_11] : memref<8x16x256xf32, #tpu.memory_space<vmem>>, vector<8x16x256xf32>
    tpu.vector_store %arg12[%c0_9, %c0_10, %c0_11], %11 {strides = array<i32>} : memref<8x16x256xf32, #tpu.memory_space<vmem>>, vector<8x16x256xf32>,
    %cst_12 = arith.constant 0.000000e+00 : f32
    %13 = vector.broadcast %cst_12 : f32 to vector<16x64xf32>
    %c0_13 = arith.constant 0 : index
    %c0_14 = arith.constant 0 : index
    %14 = vector.load %arg4[%c0_13, %c0_14] : memref<64x256xbf16, #tpu.memory_space<vmem>>, vector<64x256xbf16>
    %c0_i32 = arith.constant 0 : i32
    %c8_i32 = arith.constant 8 : i32
    %15 = arith.addi %c0_i32, %c8_i32 : i32
    %c1_i32 = arith.constant 1 : i32
    %16:2 = scf.for %arg15 = %c0_i32 to %15 step %c1_i32 iter_args(%arg16 = %13, %arg17 = %13) -> (vector<16x64xf32>, vector<16x64xf32>)  : i32 {
      %44 = arith.index_cast %arg15 : i32 to index
      %c0_44 = arith.constant 0 : index
      %c0_45 = arith.constant 0 : index
      %45 = vector.load %arg11[%44, %c0_44, %c0_45] : memref<8x16x256xf32, #tpu.memory_space<vmem>>, vector<1x16x256xf32>
      %46 = vector.shape_cast %45 : vector<1x16x256xf32> to vector<16x256xf32>
      %47 = arith.truncf %arg16 : vector<16x64xf32> to vector<16x64xbf16>
      %cst_46 = arith.constant dense<0.000000e+00> : vector<16x256xf32>
      %48 = tpu.matmul %47, %14, %cst_46 {dimension_numbers = #tpu.dot_dimension_numbers<[1], [0], [0], [1], [0, 0, 1, 1], [], []>} : vector<16x64xbf16>, vector<64x256xbf16>, vector<16x256xf32> -> vector<16x256xf32>
      %49 = arith.addf %46, %48 : vector<16x256xf32>
      %50 = vector.extract_strided_slice %49 {offsets = [0, 0], sizes = [16, 64], strides = [1, 1]} : vector<16x256xf32> to vector<16x64xf32>
      %cst_47 = arith.constant 0.000000e+00 : f32
      %51 = vector.broadcast %cst_47 : f32 to vector<16x64xf32>
      %52 = arith.subf %51, %50 : vector<16x64xf32>
      %53 = math.exp %52 : vector<16x64xf32>
      %cst_48 = arith.constant 1.000000e+00 : f32
      %54 = vector.broadcast %cst_48 : f32 to vector<16x64xf32>
      %55 = arith.addf %54, %53 : vector<16x64xf32>
      %cst_49 = arith.constant 1.000000e+00 : f32
      %56 = vector.broadcast %cst_49 : f32 to vector<16x64xf32>
      %57 = arith.divf %56, %55 : vector<16x64xf32>
      %58 = vector.extract_strided_slice %49 {offsets = [0, 64], sizes = [16, 64], strides = [1, 1]} : vector<16x256xf32> to vector<16x64xf32>
      %cst_50 = arith.constant 0.000000e+00 : f32
      %59 = vector.broadcast %cst_50 : f32 to vector<16x64xf32>
      %60 = arith.subf %59, %58 : vector<16x64xf32>
      %61 = math.exp %60 : vector<16x64xf32>
      %cst_51 = arith.constant 1.000000e+00 : f32
      %62 = vector.broadcast %cst_51 : f32 to vector<16x64xf32>
      %63 = arith.addf %62, %61 : vector<16x64xf32>
      %cst_52 = arith.constant 1.000000e+00 : f32
      %64 = vector.broadcast %cst_52 : f32 to vector<16x64xf32>
      %65 = arith.divf %64, %63 : vector<16x64xf32>
      %66 = vector.extract_strided_slice %49 {offsets = [0, 128], sizes = [16, 64], strides = [1, 1]} : vector<16x256xf32> to vector<16x64xf32>
      %67 = math.tanh %66 : vector<16x64xf32>
      %68 = vector.extract_strided_slice %49 {offsets = [0, 192], sizes = [16, 64], strides = [1, 1]} : vector<16x256xf32> to vector<16x64xf32>
      %cst_53 = arith.constant 0.000000e+00 : f32
      %69 = vector.broadcast %cst_53 : f32 to vector<16x64xf32>
      %70 = arith.subf %69, %68 : vector<16x64xf32>
      %71 = math.exp %70 : vector<16x64xf32>
      %cst_54 = arith.constant 1.000000e+00 : f32
      %72 = vector.broadcast %cst_54 : f32 to vector<16x64xf32>
      %73 = arith.addf %72, %71 : vector<16x64xf32>
      %cst_55 = arith.constant 1.000000e+00 : f32
      %74 = vector.broadcast %cst_55 : f32 to vector<16x64xf32>
      %75 = arith.divf %74, %73 : vector<16x64xf32>
      %76 = arith.mulf %65, %arg17 : vector<16x64xf32>
      %77 = arith.mulf %57, %67 : vector<16x64xf32>
      %78 = arith.addf %76, %77 : vector<16x64xf32>
      %79 = math.tanh %78 : vector<16x64xf32>
      %80 = arith.mulf %75, %79 : vector<16x64xf32>
      %81 = arith.index_cast %arg15 : i32 to index
      %c0_56 = arith.constant 0 : index
      %c0_57 = arith.constant 0 : index
      %82 = vector.load %arg13[%81, %c0_56, %c0_57] : memref<8x16x64xf32, #tpu.memory_space<vmem>>, vector<1x16x64xf32>
      %83 = vector.shape_cast %82 : vector<1x16x64xf32> to vector<16x64xf32>
      %84 = vector.shape_cast %80 : vector<16x64xf32> to vector<1x16x64xf32>
      tpu.vector_store %arg13[%81, %c0_56, %c0_57], %84 {strides = array<i32>} : memref<8x16x64xf32, #tpu.memory_space<vmem>>, vector<1x16x64xf32>,
      scf.yield %80, %78 : vector<16x64xf32>, vector<16x64xf32>
    }
    %c8_i32_15 = arith.constant 8 : i32
    %c0_16 = arith.constant 0 : index
    %c0_17 = arith.constant 0 : index
    %17 = vector.load %arg5[%c0_16, %c0_17] : memref<64x256xbf16, #tpu.memory_space<vmem>>, vector<64x256xbf16>
    %c0_i32_18 = arith.constant 0 : i32
    %c8_i32_19 = arith.constant 8 : i32
    %18 = arith.addi %c0_i32_18, %c8_i32_19 : i32
    %c1_i32_20 = arith.constant 1 : i32
    %19:2 = scf.for %arg15 = %c0_i32_18 to %18 step %c1_i32_20 iter_args(%arg16 = %13, %arg17 = %13) -> (vector<16x64xf32>, vector<16x64xf32>)  : i32 {
      %c7_i32 = arith.constant 7 : i32
      %44 = arith.subi %c7_i32, %arg15 : i32
      %45 = arith.index_cast %44 : i32 to index
      %c0_44 = arith.constant 0 : index
      %c0_45 = arith.constant 0 : index
      %46 = vector.load %arg12[%45, %c0_44, %c0_45] : memref<8x16x256xf32, #tpu.memory_space<vmem>>, vector<1x16x256xf32>
      %47 = vector.shape_cast %46 : vector<1x16x256xf32> to vector<16x256xf32>
      %48 = arith.truncf %arg16 : vector<16x64xf32> to vector<16x64xbf16>
      %cst_46 = arith.constant dense<0.000000e+00> : vector<16x256xf32>
      %49 = tpu.matmul %48, %17, %cst_46 {dimension_numbers = #tpu.dot_dimension_numbers<[1], [0], [0], [1], [0, 0, 1, 1], [], []>} : vector<16x64xbf16>, vector<64x256xbf16>, vector<16x256xf32> -> vector<16x256xf32>
      %50 = arith.addf %47, %49 : vector<16x256xf32>
      %51 = vector.extract_strided_slice %50 {offsets = [0, 0], sizes = [16, 64], strides = [1, 1]} : vector<16x256xf32> to vector<16x64xf32>
      %cst_47 = arith.constant 0.000000e+00 : f32
      %52 = vector.broadcast %cst_47 : f32 to vector<16x64xf32>
      %53 = arith.subf %52, %51 : vector<16x64xf32>
      %54 = math.exp %53 : vector<16x64xf32>
      %cst_48 = arith.constant 1.000000e+00 : f32
      %55 = vector.broadcast %cst_48 : f32 to vector<16x64xf32>
      %56 = arith.addf %55, %54 : vector<16x64xf32>
      %cst_49 = arith.constant 1.000000e+00 : f32
      %57 = vector.broadcast %cst_49 : f32 to vector<16x64xf32>
      %58 = arith.divf %57, %56 : vector<16x64xf32>
      %59 = vector.extract_strided_slice %50 {offsets = [0, 64], sizes = [16, 64], strides = [1, 1]} : vector<16x256xf32> to vector<16x64xf32>
      %cst_50 = arith.constant 0.000000e+00 : f32
      %60 = vector.broadcast %cst_50 : f32 to vector<16x64xf32>
      %61 = arith.subf %60, %59 : vector<16x64xf32>
      %62 = math.exp %61 : vector<16x64xf32>
      %cst_51 = arith.constant 1.000000e+00 : f32
      %63 = vector.broadcast %cst_51 : f32 to vector<16x64xf32>
      %64 = arith.addf %63, %62 : vector<16x64xf32>
      %cst_52 = arith.constant 1.000000e+00 : f32
      %65 = vector.broadcast %cst_52 : f32 to vector<16x64xf32>
      %66 = arith.divf %65, %64 : vector<16x64xf32>
      %67 = vector.extract_strided_slice %50 {offsets = [0, 128], sizes = [16, 64], strides = [1, 1]} : vector<16x256xf32> to vector<16x64xf32>
      %68 = math.tanh %67 : vector<16x64xf32>
      %69 = vector.extract_strided_slice %50 {offsets = [0, 192], sizes = [16, 64], strides = [1, 1]} : vector<16x256xf32> to vector<16x64xf32>
      %cst_53 = arith.constant 0.000000e+00 : f32
      %70 = vector.broadcast %cst_53 : f32 to vector<16x64xf32>
      %71 = arith.subf %70, %69 : vector<16x64xf32>
      %72 = math.exp %71 : vector<16x64xf32>
      %cst_54 = arith.constant 1.000000e+00 : f32
      %73 = vector.broadcast %cst_54 : f32 to vector<16x64xf32>
      %74 = arith.addf %73, %72 : vector<16x64xf32>
      %cst_55 = arith.constant 1.000000e+00 : f32
      %75 = vector.broadcast %cst_55 : f32 to vector<16x64xf32>
      %76 = arith.divf %75, %74 : vector<16x64xf32>
      %77 = arith.mulf %66, %arg17 : vector<16x64xf32>
      %78 = arith.mulf %58, %68 : vector<16x64xf32>
      %79 = arith.addf %77, %78 : vector<16x64xf32>
      %80 = math.tanh %79 : vector<16x64xf32>
      %81 = arith.mulf %76, %80 : vector<16x64xf32>
      %82 = arith.index_cast %44 : i32 to index
      %c0_56 = arith.constant 0 : index
      %c0_57 = arith.constant 0 : index
      %83 = vector.load %arg14[%82, %c0_56, %c0_57] : memref<8x16x64xf32, #tpu.memory_space<vmem>>, vector<1x16x64xf32>
      %84 = vector.shape_cast %83 : vector<1x16x64xf32> to vector<16x64xf32>
      %85 = vector.shape_cast %81 : vector<16x64xf32> to vector<1x16x64xf32>
      tpu.vector_store %arg14[%82, %c0_56, %c0_57], %85 {strides = array<i32>} : memref<8x16x64xf32, #tpu.memory_space<vmem>>, vector<1x16x64xf32>,
      scf.yield %81, %79 : vector<16x64xf32>, vector<16x64xf32>
    }
    %c8_i32_21 = arith.constant 8 : i32
    %c0_22 = arith.constant 0 : index
    %c0_23 = arith.constant 0 : index
    %c0_24 = arith.constant 0 : index
    %20 = vector.load %arg13[%c0_22, %c0_23, %c0_24] : memref<8x16x64xf32, #tpu.memory_space<vmem>>, vector<8x16x64xf32>
    %21 = vector.shape_cast %20 : vector<8x16x64xf32> to vector<128x64xf32>
    %22 = arith.truncf %21 : vector<128x64xf32> to vector<128x64xbf16>
    %c0_25 = arith.constant 0 : index
    %c0_26 = arith.constant 0 : index
    %c0_27 = arith.constant 0 : index
    %23 = vector.load %arg14[%c0_25, %c0_26, %c0_27] : memref<8x16x64xf32, #tpu.memory_space<vmem>>, vector<8x16x64xf32>
    %24 = vector.shape_cast %23 : vector<8x16x64xf32> to vector<128x64xf32>
    %25 = arith.truncf %24 : vector<128x64xf32> to vector<128x64xbf16>
    %c0_28 = arith.constant 0 : index
    %c0_29 = arith.constant 0 : index
    %26 = vector.load %arg6[%c0_28, %c0_29] : memref<128x128xbf16, #tpu.memory_space<vmem>>, vector<64x128xbf16>
    %cst_30 = arith.constant dense<0.000000e+00> : vector<128x128xf32>
    %27 = tpu.matmul %22, %26, %cst_30 {dimension_numbers = #tpu.dot_dimension_numbers<[1], [0], [0], [1], [0, 0, 1, 1], [], []>} : vector<128x64xbf16>, vector<64x128xbf16>, vector<128x128xf32> -> vector<128x128xf32>
    %c64 = arith.constant 64 : index
    %c0_31 = arith.constant 0 : index
    %28 = vector.load %arg6[%c64, %c0_31] : memref<128x128xbf16, #tpu.memory_space<vmem>>, vector<64x128xbf16>
    %cst_32 = arith.constant dense<0.000000e+00> : vector<128x128xf32>
    %29 = tpu.matmul %25, %28, %cst_32 {dimension_numbers = #tpu.dot_dimension_numbers<[1], [0], [0], [1], [0, 0, 1, 1], [], []>} : vector<128x64xbf16>, vector<64x128xbf16>, vector<128x128xf32> -> vector<128x128xf32>
    %30 = arith.addf %27, %29 : vector<128x128xf32>
    %c0_33 = arith.constant 0 : index
    %c0_34 = arith.constant 0 : index
    %31 = vector.load %arg7[%c0_33, %c0_34] : memref<1x128xf32, #tpu.memory_space<vmem>>, vector<1x128xf32>
    %32 = vector.broadcast %31 : vector<1x128xf32> to vector<128x128xf32>
    %33 = arith.addf %30, %32 : vector<128x128xf32>
    %cst_35 = arith.constant 0.000000e+00 : f32
    %34 = vector.broadcast %cst_35 : f32 to vector<128x128xf32>
    %35 = arith.maximumf %33, %34 : vector<128x128xf32>
    %36 = arith.truncf %35 : vector<128x128xf32> to vector<128x128xbf16>
    %c0_36 = arith.constant 0 : index
    %c0_37 = arith.constant 0 : index
    %37 = vector.load %arg8[%c0_36, %c0_37] : memref<128x128xbf16, #tpu.memory_space<vmem>>, vector<128x128xbf16>
    %cst_38 = arith.constant dense<0.000000e+00> : vector<128x128xf32>
    %38 = tpu.matmul %36, %37, %cst_38 {dimension_numbers = #tpu.dot_dimension_numbers<[1], [0], [0], [1], [0, 0, 1, 1], [], []>} : vector<128x128xbf16>, vector<128x128xbf16>, vector<128x128xf32> -> vector<128x128xf32>
    %c0_39 = arith.constant 0 : index
    %c0_40 = arith.constant 0 : index
    %39 = vector.load %arg9[%c0_39, %c0_40] : memref<1x128xf32, #tpu.memory_space<vmem>>, vector<1x128xf32>
    %40 = vector.broadcast %39 : vector<1x128xf32> to vector<128x128xf32>
    %41 = arith.addf %38, %40 : vector<128x128xf32>
    %42 = vector.shape_cast %41 : vector<128x128xf32> to vector<8x16x128xf32>
    %c0_41 = arith.constant 0 : index
    %c0_42 = arith.constant 0 : index
    %c0_43 = arith.constant 0 : index
    %43 = vector.load %arg10[%c0_41, %c0_42, %c0_43] : memref<8x16x128xf32, #tpu.memory_space<vmem>>, vector<8x16x128xf32>
    tpu.vector_store %arg10[%c0_41, %c0_42, %c0_43], %42 {strides = array<i32>} : memref<8x16x128xf32, #tpu.memory_space<vmem>>, vector<8x16x128xf32>,
    return
  }
  func.func @transform_0(%arg0: i32) -> (i32, i32, i32) {
    %c0_i32 = arith.constant 0 : i32
    %c0_i32_0 = arith.constant 0 : i32
    %c0_i32_1 = arith.constant 0 : i32
    return %c0_i32, %arg0, %c0_i32_0 : i32, i32, i32
  }
  func.func @transform_1(%arg0: i32) -> (i32, i32) {
    %c0_i32 = arith.constant 0 : i32
    %c0_i32_0 = arith.constant 0 : i32
    %c0_i32_1 = arith.constant 0 : i32
    return %c0_i32, %c0_i32_0 : i32, i32
  }
  func.func @transform_2(%arg0: i32) -> (i32, i32) {
    %c0_i32 = arith.constant 0 : i32
    %c0_i32_0 = arith.constant 0 : i32
    %c0_i32_1 = arith.constant 0 : i32
    return %c0_i32, %c0_i32_0 : i32, i32
  }
  func.func @transform_3(%arg0: i32) -> (i32, i32) {
    %c0_i32 = arith.constant 0 : i32
    %c0_i32_0 = arith.constant 0 : i32
    %c0_i32_1 = arith.constant 0 : i32
    return %c0_i32, %c0_i32_0 : i32, i32
  }
  func.func @transform_4(%arg0: i32) -> (i32, i32) {
    %c0_i32 = arith.constant 0 : i32
    %c0_i32_0 = arith.constant 0 : i32
    %c0_i32_1 = arith.constant 0 : i32
    return %c0_i32, %c0_i32_0 : i32, i32
  }
  func.func @transform_5(%arg0: i32) -> (i32, i32) {
    %c0_i32 = arith.constant 0 : i32
    %c0_i32_0 = arith.constant 0 : i32
    %c0_i32_1 = arith.constant 0 : i32
    return %c0_i32, %c0_i32_0 : i32, i32
  }
  func.func @transform_6(%arg0: i32) -> (i32, i32) {
    %c0_i32 = arith.constant 0 : i32
    %c0_i32_0 = arith.constant 0 : i32
    %c0_i32_1 = arith.constant 0 : i32
    return %c0_i32, %c0_i32_0 : i32, i32
  }
  func.func @transform_7(%arg0: i32) -> (i32, i32) {
    %c0_i32 = arith.constant 0 : i32
    %c0_i32_0 = arith.constant 0 : i32
    %c0_i32_1 = arith.constant 0 : i32
    return %c0_i32, %c0_i32_0 : i32, i32
  }
  func.func @transform_8(%arg0: i32) -> (i32, i32) {
    %c0_i32 = arith.constant 0 : i32
    %c0_i32_0 = arith.constant 0 : i32
    %c0_i32_1 = arith.constant 0 : i32
    return %c0_i32, %c0_i32_0 : i32, i32
  }
  func.func @transform_9(%arg0: i32) -> (i32, i32, i32) {
    %c0_i32 = arith.constant 0 : i32
    %c0_i32_0 = arith.constant 0 : i32
    %c0_i32_1 = arith.constant 0 : i32
    return %c0_i32, %arg0, %c0_i32_0 : i32, i32, i32
  }
}

</mosaic_0001>

<llo_original>
// kernel: model4_forward.1
$region0: #{model4_forward.1}
  #allocation0 [shape = 'u32[]', space=smem, size = 0x4, offset = 0x4, fixed_abs, tag = 'smem constant byte address 0x4 - core index']
  #allocation1 [shape = 'u32[72,128]{1,0:T(1,128)}', space=vmem, size = 0x9000, scoped, tag = 'internal scratch']
  #allocation2 [shape = 'f32[8,16,256]{2,1,0:T(8,128)}', space=vmem, size = 0x20000, scoped, tag = 'scratch operand']
  #allocation3 [shape = 'f32[8,16,256]{2,1,0:T(8,128)}', space=vmem, size = 0x20000, scoped, tag = 'scratch operand']
  #allocation4 [shape = 'f32[8,16,64]{2,1,0:T(8,128)}', space=vmem, size = 0x10000, scoped, tag = 'scratch operand']
  #allocation5 [shape = 'f32[8,16,64]{2,1,0:T(8,128)}', space=vmem, size = 0x10000, scoped, tag = 'scratch operand']
  %s0 = inlined_call_operand.vmem [shape: bf16[8,16,512], index: 0, kind: input, shape index: {}]
  %s1 = inlined_call_operand.hbm [shape: bf16[512,512], index: 1, kind: input, shape index: {}]
  %s2 = inlined_call_operand.vmem [shape: f32[1,512], index: 2, kind: input, shape index: {}]
  %s3 = inlined_call_operand.vmem [shape: bf16[64,256], index: 3, kind: input, shape index: {}]
  %s4 = inlined_call_operand.vmem [shape: bf16[64,256], index: 4, kind: input, shape index: {}]
  %s5 = inlined_call_operand.vmem [shape: bf16[128,128], index: 5, kind: input, shape index: {}]
  %s6 = inlined_call_operand.vmem [shape: f32[1,128], index: 6, kind: input, shape index: {}]
  %s7 = inlined_call_operand.vmem [shape: bf16[128,128], index: 7, kind: input, shape index: {}]
  %s8 = inlined_call_operand.vmem [shape: f32[1,128], index: 8, kind: input, shape index: {}]
  %s9 = inlined_call_operand.vmem [shape: f32[8,16,128], index: 9, kind: output, shape index: {}]
  %s10 = sld [smem:[#allocation0]]
  $region64: #{model4_forward.1} parent=0
    _
  %s12 = ssub.s32 1, %s10
  %s13 = scalar_select 0, %s12, %s10
  $region1: #{model4_forward.1} parent=0
    #allocation6 [shape = 'u8[524288]{0}', space=vmem, size = 0x80000, scoped, tag = 'input window, operand 1, single buffered']
    #allocation7 [shape = 's32[1]{0}', space=sflag, size = 0x4, scoped, tag = 'scoped memory for model4_forward.1']
    %14 = vsyncpa [#allocation7], 0
    // Predicated region
    $region2: #{model4_forward.1} parent=1 // pred_check
      _
    $region3: #{model4_forward.1} parent=1 // pred_check_branch
      %16 = sbr.rel (0) target = $region5
    $region4: #{model4_forward.1} parent=1 // pred_region
      _
    $region5: #{model4_forward.1} parent=1 // pred_fallthru
      _
    // Predicated region
    $region6: #{model4_forward.1} parent=1 // pred_check
      _
    $region7: #{model4_forward.1} parent=1 // pred_check_branch
      %18 = sbr.rel (0) target = $region9
    $region8: #{model4_forward.1} parent=1 // pred_region
      %20 = vsyncadd [#allocation7], 0
      %s21 = sshll.u32 %s1, 4
      %s22 = int_to_ptr.hbm [resolvable:$true] %s21
      %s23 = sshll.u32 [#allocation6], 4
      %s24 = int_to_ptr.vmem [resolvable:$true] %s23
      %29 = dma.hbm_to_vmem [thread:$0]  %s22, 16384, %s24, [#allocation7], 256, 256, 16
    $region9: #{model4_forward.1} parent=1 // pred_fallthru
      _
    // Predicated region
    $region10: #{model4_forward.1} parent=1 // pred_check
      _
    $region11: #{model4_forward.1} parent=1 // pred_check_branch
      %31 = sbr.rel (0) target = $region13
    $region12: #{model4_forward.1} parent=1 // pred_region
      _
    $region13: #{model4_forward.1} parent=1 // pred_fallthru
      _
    // Predicated region
    $region14: #{model4_forward.1} parent=1 // pred_check
      _
    $region15: #{model4_forward.1} parent=1 // pred_check_branch
      %33 = sbr.rel (0) target = $region17
    $region16: #{model4_forward.1} parent=1 // pred_region
      _
    $region17: #{model4_forward.1} parent=1 // pred_fallthru
      _
    // Predicated region
    $region18: #{model4_forward.1} parent=1 // pred_check
      _
    $region19: #{model4_forward.1} parent=1 // pred_check_branch
      %35 = sbr.rel (0) target = $region21
    $region20: #{model4_forward.1} parent=1 // pred_region
      _
    $region21: #{model4_forward.1} parent=1 // pred_fallthru
      _
    // Predicated region
    $region22: #{model4_forward.1} parent=1 // pred_check
      _
    $region23: #{model4_forward.1} parent=1 // pred_check_branch
      %37 = sbr.rel (0) target = $region25
    $region24: #{model4_forward.1} parent=1 // pred_region
      _
    $region25: #{model4_forward.1} parent=1 // pred_fallthru
      _
    // Predicated region
    $region26: #{model4_forward.1} parent=1 // pred_check
      _
    $region27: #{model4_forward.1} parent=1 // pred_check_branch
      %39 = sbr.rel (0) target = $region29
    $region28: #{model4_forward.1} parent=1 // pred_region
      _
    $region29: #{model4_forward.1} parent=1 // pred_fallthru
      _
    // Predicated region
    $region30: #{model4_forward.1} parent=1 // pred_check
      _
    $region31: #{model4_forward.1} parent=1 // pred_check_branch
      %41 = sbr.rel (0) target = $region33
    $region32: #{model4_forward.1} parent=1 // pred_region
      _
    $region33: #{model4_forward.1} parent=1 // pred_fallthru
      _
    // Predicated region
    $region34: #{model4_forward.1} parent=1 // pred_check
      _
    $region35: #{model4_forward.1} parent=1 // pred_check_branch
      %43 = sbr.rel (0) target = $region37
    $region36: #{model4_forward.1} parent=1 // pred_region
      _
    $region37: #{model4_forward.1} parent=1 // pred_fallthru
      _
    // Predicated region
    $region38: #{model4_forward.1} parent=1 // pred_check
      _
    $region39: #{model4_forward.1} parent=1 // pred_check_branch
      %45 = sbr.rel (0) target = $region41
    $region40: #{model4_forward.1} parent=1 // pred_region
      %47 = dma.done [#allocation7], 16384
    $region41: #{model4_forward.1} parent=1 // pred_fallthru
      _
    %v49 = vld [vmem:[%s0] sm:$0xff]
    %v50 = vld [vmem:[%s0 + $0x8] sm:$0xff]
    %v51 = vld [vmem:[%s0 + $0x10] sm:$0xff]
    %v52 = vld [vmem:[%s0 + $0x18] sm:$0xff]
    %v53 = vld [vmem:[%s0 + $0x20] sm:$0xff]
    %v54 = vld [vmem:[%s0 + $0x28] sm:$0xff]
    %v55 = vld [vmem:[%s0 + $0x30] sm:$0xff]
    %v56 = vld [vmem:[%s0 + $0x38] sm:$0xff]
    %v57 = vld [vmem:[%s0 + $0x40] sm:$0xff]
    %v58 = vld [vmem:[%s0 + $0x48] sm:$0xff]
    %v59 = vld [vmem:[%s0 + $0x50] sm:$0xff]
    %v60 = vld [vmem:[%s0 + $0x58] sm:$0xff]
    %v61 = vld [vmem:[%s0 + $0x60] sm:$0xff]
    %v62 = vld [vmem:[%s0 + $0x68] sm:$0xff]
    %v63 = vld [vmem:[%s0 + $0x70] sm:$0xff]
    %v64 = vld [vmem:[%s0 + $0x78] sm:$0xff]
    %v65 = vld [vmem:[%s0 + $0x80] sm:$0xff]
    %v66 = vld [vmem:[%s0 + $0x88] sm:$0xff]
    %v67 = vld [vmem:[%s0 + $0x90] sm:$0xff]
    %v68 = vld [vmem:[%s0 + $0x98] sm:$0xff]
    %v69 = vld [vmem:[%s0 + $0xa0] sm:$0xff]
    %v70 = vld [vmem:[%s0 + $0xa8] sm:$0xff]
    %v71 = vld [vmem:[%s0 + $0xb0] sm:$0xff]
    %v72 = vld [vmem:[%s0 + $0xb8] sm:$0xff]
    %v73 = vld [vmem:[%s0 + $0xc0] sm:$0xff]
    %v74 = vld [vmem:[%s0 + $0xc8] sm:$0xff]
    %v75 = vld [vmem:[%s0 + $0xd0] sm:$0xff]
    %v76 = vld [vmem:[%s0 + $0xd8] sm:$0xff]
    %v77 = vld [vmem:[%s0 + $0xe0] sm:$0xff]
    %v78 = vld [vmem:[%s0 + $0xe8] sm:$0xff]
    %v79 = vld [vmem:[%s0 + $0xf0] sm:$0xff]
    %v80 = vld [vmem:[%s0 + $0xf8] sm:$0xff]
    %v81 = vld [vmem:[#allocation6] sm:$0xff]
    %v82 = vld [vmem:[#allocation6 + $0x8] sm:$0xff]
    %v83 = vld [vmem:[#allocation6 + $0x10] sm:$0xff]
    %v84 = vld [vmem:[#allocation6 + $0x18] sm:$0xff]
    %v85 = vld [vmem:[#allocation6 + $0x20] sm:$0xff]
    %v86 = vld [vmem:[#allocation6 + $0x28] sm:$0xff]
    %v87 = vld [vmem:[#allocation6 + $0x30] sm:$0xff]
    %v88 = vld [vmem:[#allocation6 + $0x38] sm:$0xff]
    %v89 = vld [vmem:[#allocation6 + $0x40] sm:$0xff]
    %v90 = vld [vmem:[#allocation6 + $0x48] sm:$0xff]
    %v91 = vld [vmem:[#allocation6 + $0x50] sm:$0xff]
    %v92 = vld [vmem:[#allocation6 + $0x58] sm:$0xff]
    %v93 = vld [vmem:[#allocation6 + $0x60] sm:$0xff]
    %v94 = vld [vmem:[#allocation6 + $0x68] sm:$0xff]
    %v95 = vld [vmem:[#allocation6 + $0x70] sm:$0xff]
    %v96 = vld [vmem:[#allocation6 + $0x78] sm:$0xff]
    %v97 = vld [vmem:[#allocation6 + $0x80] sm:$0xff]
    %v98 = vld [vmem:[#allocation6 + $0x88] sm:$0xff]
    %v99 = vld [vmem:[#allocation6 + $0x90] sm:$0xff]
    %v100 = vld [vmem:[#allocation6 + $0x98] sm:$0xff]
    %v101 = vld [vmem:[#allocation6 + $0xa0] sm:$0xff]
    %v102 = vld [vmem:[#allocation6 + $0xa8] sm:$0xff]
    %v103 = vld [vmem:[#allocation6 + $0xb0] sm:$0xff]
    %v104 = vld [vmem:[#allocation6 + $0xb8] sm:$0xff]
    %v105 = vld [vmem:[#allocation6 + $0xc0] sm:$0xff]
    %v106 = vld [vmem:[#allocation6 + $0xc8] sm:$0xff]
    %v107 = vld [vmem:[#allocation6 + $0xd0] sm:$0xff]
    %v108 = vld [vmem:[#allocation6 + $0xd8] sm:$0xff]
    %v109 = vld [vmem:[#allocation6 + $0xe0] sm:$0xff]
    %v110 = vld [vmem:[#allocation6 + $0xe8] sm:$0xff]
    %v111 = vld [vmem:[#allocation6 + $0xf0] sm:$0xff]
    %v112 = vld [vmem:[#allocation6 + $0xf8] sm:$0xff]
    %v113 = vld [vmem:[#allocation6 + $0x100] sm:$0xff]
    %v114 = vld [vmem:[#allocation6 + $0x108] sm:$0xff]
    %v115 = vld [vmem:[#allocation6 + $0x110] sm:$0xff]
    %v116 = vld [vmem:[#allocation6 + $0x118] sm:$0xff]
    %v117 = vld [vmem:[#allocation6 + $0x120] sm:$0xff]
    %v118 = vld [vmem:[#allocation6 + $0x128] sm:$0xff]
    %v119 = vld [vmem:[#allocation6 + $0x130] sm:$0xff]
    %v120 = vld [vmem:[#allocation6 + $0x138] sm:$0xff]
    %v121 = vld [vmem:[#allocation6 + $0x140] sm:$0xff]
    %v122 = vld [vmem:[#allocation6 + $0x148] sm:$0xff]
    %v123 = vld [vmem:[#allocation6 + $0x150] sm:$0xff]
    %v124 = vld [vmem:[#allocation6 + $0x158] sm:$0xff]
    %v125 = vld [vmem:[#allocation6 + $0x160] sm:$0xff]
    %v126 = vld [vmem:[#allocation6 + $0x168] sm:$0xff]
    %v127 = vld [vmem:[#allocation6 + $0x170] sm:$0xff]
    %v128 = vld [vmem:[#allocation6 + $0x178] sm:$0xff]
    %v129 = vld [vmem:[#allocation6 + $0x180] sm:$0xff]
    %v130 = vld [vmem:[#allocation6 + $0x188] sm:$0xff]
    %v131 = vld [vmem:[#allocation6 + $0x190] sm:$0xff]
    %v132 = vld [vmem:[#allocation6 + $0x198] sm:$0xff]
    %v133 = vld [vmem:[#allocation6 + $0x1a0] sm:$0xff]
    %v134 = vld [vmem:[#allocation6 + $0x1a8] sm:$0xff]
    %v135 = vld [vmem:[#allocation6 + $0x1b0] sm:$0xff]
    %v136 = vld [vmem:[#allocation6 + $0x1b8] sm:$0xff]
    %v137 = vld [vmem:[#allocation6 + $0x1c0] sm:$0xff]
    %v138 = vld [vmem:[#allocation6 + $0x1c8] sm:$0xff]
    %v139 = vld [vmem:[#allocation6 + $0x1d0] sm:$0xff]
    %v140 = vld [vmem:[#allocation6 + $0x1d8] sm:$0xff]
    %v141 = vld [vmem:[#allocation6 + $0x1e0] sm:$0xff]
    %v142 = vld [vmem:[#allocation6 + $0x1e8] sm:$0xff]
    %v143 = vld [vmem:[#allocation6 + $0x1f0] sm:$0xff]
    %v144 = vld [vmem:[#allocation6 + $0x1f8] sm:$0xff]
    %v145 = vld [vmem:[#allocation6 + $0x200] sm:$0xff]
    %v146 = vld [vmem:[#allocation6 + $0x208] sm:$0xff]
    %v147 = vld [vmem:[#allocation6 + $0x210] sm:$0xff]
    %v148 = vld [vmem:[#allocation6 + $0x218] sm:$0xff]
    %v149 = vld [vmem:[#allocation6 + $0x220] sm:$0xff]
    %v150 = vld [vmem:[#allocation6 + $0x228] sm:$0xff]
    %v151 = vld [vmem:[#allocation6 + $0x230] sm:$0xff]
    %v152 = vld [vmem:[#allocation6 + $0x238] sm:$0xff]
    %v153 = vld [vmem:[#allocation6 + $0x240] sm:$0xff]
    %v154 = vld [vmem:[#allocation6 + $0x248] sm:$0xff]
    %v155 = vld [vmem:[#allocation6 + $0x250] sm:$0xff]
    %v156 = vld [vmem:[#allocation6 + $0x258] sm:$0xff]
    %v157 = vld [vmem:[#allocation6 + $0x260] sm:$0xff]
    %v158 = vld [vmem:[#allocation6 + $0x268] sm:$0xff]
    %v159 = vld [vmem:[#allocation6 + $0x270] sm:$0xff]
    %v160 = vld [vmem:[#allocation6 + $0x278] sm:$0xff]
    %v161 = vld [vmem:[#allocation6 + $0x280] sm:$0xff]
    %v162 = vld [vmem:[#allocation6 + $0x288] sm:$0xff]
    %v163 = vld [vmem:[#allocation6 + $0x290] sm:$0xff]
    %v164 = vld [vmem:[#allocation6 + $0x298] sm:$0xff]
    %v165 = vld [vmem:[#allocation6 + $0x2a0] sm:$0xff]
    %v166 = vld [vmem:[#allocation6 + $0x2a8] sm:$0xff]
    %v167 = vld [vmem:[#allocation6 + $0x2b0] sm:$0xff]
    %v168 = vld [vmem:[#allocation6 + $0x2b8] sm:$0xff]
    %v169 = vld [vmem:[#allocation6 + $0x2c0] sm:$0xff]
    %v170 = vld [vmem:[#allocation6 + $0x2c8] sm:$0xff]
    %v171 = vld [vmem:[#allocation6 + $0x2d0] sm:$0xff]
    %v172 = vld [vmem:[#allocation6 + $0x2d8] sm:$0xff]
    %v173 = vld [vmem:[#allocation6 + $0x2e0] sm:$0xff]
    %v174 = vld [vmem:[#allocation6 + $0x2e8] sm:$0xff]
    %v175 = vld [vmem:[#allocation6 + $0x2f0] sm:$0xff]
    %v176 = vld [vmem:[#allocation6 + $0x2f8] sm:$0xff]
    %v177 = vld [vmem:[#allocation6 + $0x300] sm:$0xff]
    %v178 = vld [vmem:[#allocation6 + $0x308] sm:$0xff]
    %v179 = vld [vmem:[#allocation6 + $0x310] sm:$0xff]
    %v180 = vld [vmem:[#allocation6 + $0x318] sm:$0xff]
    %v181 = vld [vmem:[#allocation6 + $0x320] sm:$0xff]
    %v182 = vld [vmem:[#allocation6 + $0x328] sm:$0xff]
    %v183 = vld [vmem:[#allocation6 + $0x330] sm:$0xff]
    %v184 = vld [vmem:[#allocation6 + $0x338] sm:$0xff]
    %v185 = vld [vmem:[#allocation6 + $0x340] sm:$0xff]
    %v186 = vld [vmem:[#allocation6 + $0x348] sm:$0xff]
    %v187 = vld [vmem:[#allocation6 + $0x350] sm:$0xff]
    %v188 = vld [vmem:[#allocation6 + $0x358] sm:$0xff]
    %v189 = vld [vmem:[#allocation6 + $0x360] sm:$0xff]
    %v190 = vld [vmem:[#allocation6 + $0x368] sm:$0xff]
    %v191 = vld [vmem:[#allocation6 + $0x370] sm:$0xff]
    %v192 = vld [vmem:[#allocation6 + $0x378] sm:$0xff]
    %v193 = vld [vmem:[#allocation6 + $0x380] sm:$0xff]
    %v194 = vld [vmem:[#allocation6 + $0x388] sm:$0xff]
    %v195 = vld [vmem:[#allocation6 + $0x390] sm:$0xff]
    %v196 = vld [vmem:[#allocation6 + $0x398] sm:$0xff]
    %v197 = vld [vmem:[#allocation6 + $0x3a0] sm:$0xff]
    %v198 = vld [vmem:[#allocation6 + $0x3a8] sm:$0xff]
    %v199 = vld [vmem:[#allocation6 + $0x3b0] sm:$0xff]
    %v200 = vld [vmem:[#allocation6 + $0x3b8] sm:$0xff]
    %v201 = vld [vmem:[#allocation6 + $0x3c0] sm:$0xff]
    %v202 = vld [vmem:[#allocation6 + $0x3c8] sm:$0xff]
    %v203 = vld [vmem:[#allocation6 + $0x3d0] sm:$0xff]
    %v204 = vld [vmem:[#allocation6 + $0x3d8] sm:$0xff]
    %v205 = vld [vmem:[#allocation6 + $0x3e0] sm:$0xff]
    %v206 = vld [vmem:[#allocation6 + $0x3e8] sm:$0xff]
    %v207 = vld [vmem:[#allocation6 + $0x3f0] sm:$0xff]
    %v208 = vld [vmem:[#allocation6 + $0x3f8] sm:$0xff]
    %v209 = vld [vmem:[%s2] sm:$0xf]
    %v211 = vperm.slane %v209, 0
    %v212 = vperm.slane %v209, 1
    %v213 = vperm.slane %v209, 2
    %v214 = vperm.slane %v209, 3
    %v251 = vunpack.c.l.b16 %v49
    %v252 = vunpack.c.h.b16 %v49
    %v253 = vunpack.c.l.b16 %v50
    %v254 = vunpack.c.h.b16 %v50
    %v255 = vunpack.c.l.b16 %v51
    %v256 = vunpack.c.h.b16 %v51
    %v257 = vunpack.c.l.b16 %v52
    %v258 = vunpack.c.h.b16 %v52
    %v259 = vunpack.c.l.b16 %v53
    %v260 = vunpack.c.h.b16 %v53
    %v261 = vunpack.c.l.b16 %v54
    %v262 = vunpack.c.h.b16 %v54
    %v263 = vunpack.c.l.b16 %v55
    %v264 = vunpack.c.h.b16 %v55
    %v265 = vunpack.c.l.b16 %v56
    %v266 = vunpack.c.h.b16 %v56
    %v267 = vunpack.c.l.b16 %v57
    %v268 = vunpack.c.h.b16 %v57
    %v269 = vunpack.c.l.b16 %v58
    %v270 = vunpack.c.h.b16 %v58
    %v271 = vunpack.c.l.b16 %v59
    %v272 = vunpack.c.h.b16 %v59
    %v273 = vunpack.c.l.b16 %v60
    %v274 = vunpack.c.h.b16 %v60
    %v275 = vunpack.c.l.b16 %v61
    %v276 = vunpack.c.h.b16 %v61
    %v277 = vunpack.c.l.b16 %v62
    %v278 = vunpack.c.h.b16 %v62
    %v279 = vunpack.c.l.b16 %v63
    %v280 = vunpack.c.h.b16 %v63
    %v281 = vunpack.c.l.b16 %v64
    %v282 = vunpack.c.h.b16 %v64
    %v283 = vunpack.c.l.b16 %v65
    %v284 = vunpack.c.h.b16 %v65
    %v285 = vunpack.c.l.b16 %v66
    %v286 = vunpack.c.h.b16 %v66
    %v287 = vunpack.c.l.b16 %v67
    %v288 = vunpack.c.h.b16 %v67
    %v289 = vunpack.c.l.b16 %v68
    %v290 = vunpack.c.h.b16 %v68
    %v291 = vunpack.c.l.b16 %v69
    %v292 = vunpack.c.h.b16 %v69
    %v293 = vunpack.c.l.b16 %v70
    %v294 = vunpack.c.h.b16 %v70
    %v295 = vunpack.c.l.b16 %v71
    %v296 = vunpack.c.h.b16 %v71
    %v297 = vunpack.c.l.b16 %v72
    %v298 = vunpack.c.h.b16 %v72
    %v299 = vunpack.c.l.b16 %v73
    %v300 = vunpack.c.h.b16 %v73
    %v301 = vunpack.c.l.b16 %v74
    %v302 = vunpack.c.h.b16 %v74
    %v303 = vunpack.c.l.b16 %v75
    %v304 = vunpack.c.h.b16 %v75
    %v305 = vunpack.c.l.b16 %v76
    %v306 = vunpack.c.h.b16 %v76
    %v307 = vunpack.c.l.b16 %v77
    %v308 = vunpack.c.h.b16 %v77
    %v309 = vunpack.c.l.b16 %v78
    %v310 = vunpack.c.h.b16 %v78
    %v311 = vunpack.c.l.b16 %v79
    %v312 = vunpack.c.h.b16 %v79
    %v313 = vunpack.c.l.b16 %v80
    %v314 = vunpack.c.h.b16 %v80
    %v315 = vpack.c.b16 %v255, %v251
    %v316 = vpack.c.b16 %v256, %v252
    %v317 = vpack.c.b16 %v257, %v253
    %v318 = vpack.c.b16 %v258, %v254
    %v319 = vpack.c.b16 %v263, %v259
    %v320 = vpack.c.b16 %v264, %v260
    %v321 = vpack.c.b16 %v265, %v261
    %v322 = vpack.c.b16 %v266, %v262
    %v323 = vpack.c.b16 %v271, %v267
    %v324 = vpack.c.b16 %v272, %v268
    %v325 = vpack.c.b16 %v273, %v269
    %v326 = vpack.c.b16 %v274, %v270
    %v327 = vpack.c.b16 %v279, %v275
    %v328 = vpack.c.b16 %v280, %v276
    %v329 = vpack.c.b16 %v281, %v277
    %v330 = vpack.c.b16 %v282, %v278
    %v331 = vpack.c.b16 %v287, %v283
    %v332 = vpack.c.b16 %v288, %v284
    %v333 = vpack.c.b16 %v289, %v285
    %v334 = vpack.c.b16 %v290, %v286
    %v335 = vpack.c.b16 %v295, %v291
    %v336 = vpack.c.b16 %v296, %v292
    %v337 = vpack.c.b16 %v297, %v293
    %v338 = vpack.c.b16 %v298, %v294
    %v339 = vpack.c.b16 %v303, %v299
    %v340 = vpack.c.b16 %v304, %v300
    %v341 = vpack.c.b16 %v305, %v301
    %v342 = vpack.c.b16 %v306, %v302
    %v343 = vpack.c.b16 %v311, %v307
    %v344 = vpack.c.b16 %v312, %v308
    %v345 = vpack.c.b16 %v313, %v309
    %v346 = vpack.c.b16 %v314, %v310
    %v507 = vunpack.c.l.b16 %v81
    %v508 = vunpack.c.h.b16 %v81
    %v509 = vunpack.c.l.b16 %v82
    %v510 = vunpack.c.h.b16 %v82
    %v511 = vunpack.c.l.b16 %v83
    %v512 = vunpack.c.h.b16 %v83
    %v513 = vunpack.c.l.b16 %v84
    %v514 = vunpack.c.h.b16 %v84
    %v515 = vunpack.c.l.b16 %v85
    %v516 = vunpack.c.h.b16 %v85
    %v517 = vunpack.c.l.b16 %v86
    %v518 = vunpack.c.h.b16 %v86
    %v519 = vunpack.c.l.b16 %v87
    %v520 = vunpack.c.h.b16 %v87
    %v521 = vunpack.c.l.b16 %v88
    %v522 = vunpack.c.h.b16 %v88
    %v523 = vunpack.c.l.b16 %v89
    %v524 = vunpack.c.h.b16 %v89
    %v525 = vunpack.c.l.b16 %v90
    %v526 = vunpack.c.h.b16 %v90
    %v527 = vunpack.c.l.b16 %v91
    %v528 = vunpack.c.h.b16 %v91
    %v529 = vunpack.c.l.b16 %v92
    %v530 = vunpack.c.h.b16 %v92
    %v531 = vunpack.c.l.b16 %v93
    %v532 = vunpack.c.h.b16 %v93
    %v533 = vunpack.c.l.b16 %v94
    %v534 = vunpack.c.h.b16 %v94
    %v535 = vunpack.c.l.b16 %v95
    %v536 = vunpack.c.h.b16 %v95
    %v537 = vunpack.c.l.b16 %v96
    %v538 = vunpack.c.h.b16 %v96
    %v539 = vunpack.c.l.b16 %v97
    %v540 = vunpack.c.h.b16 %v97
    %v541 = vunpack.c.l.b16 %v98
    %v542 = vunpack.c.h.b16 %v98
    %v543 = vunpack.c.l.b16 %v99
    %v544 = vunpack.c.h.b16 %v99
    %v545 = vunpack.c.l.b16 %v100
    %v546 = vunpack.c.h.b16 %v100
    %v547 = vunpack.c.l.b16 %v101
    %v548 = vunpack.c.h.b16 %v101
    %v549 = vunpack.c.l.b16 %v102
    %v550 = vunpack.c.h.b16 %v102
    %v551 = vunpack.c.l.b16 %v103
    %v552 = vunpack.c.h.b16 %v103
    %v553 = vunpack.c.l.b16 %v104
    %v554 = vunpack.c.h.b16 %v104
    %v555 = vunpack.c.l.b16 %v105
    %v556 = vunpack.c.h.b16 %v105
    %v557 = vunpack.c.l.b16 %v106
    %v558 = vunpack.c.h.b16 %v106
    %v559 = vunpack.c.l.b16 %v107
    %v560 = vunpack.c.h.b16 %v107
    %v561 = vunpack.c.l.b16 %v108
    %v562 = vunpack.c.h.b16 %v108
    %v563 = vunpack.c.l.b16 %v109
    %v564 = vunpack.c.h.b16 %v109
    %v565 = vunpack.c.l.b16 %v110
    %v566 = vunpack.c.h.b16 %v110
    %v567 = vunpack.c.l.b16 %v111
    %v568 = vunpack.c.h.b16 %v111
    %v569 = vunpack.c.l.b16 %v112
    %v570 = vunpack.c.h.b16 %v112
    %v571 = vunpack.c.l.b16 %v113
    %v572 = vunpack.c.h.b16 %v113
    %v573 = vunpack.c.l.b16 %v114
    %v574 = vunpack.c.h.b16 %v114
    %v575 = vunpack.c.l.b16 %v115
    %v576 = vunpack.c.h.b16 %v115
    %v577 = vunpack.c.l.b16 %v116
    %v578 = vunpack.c.h.b16 %v116
    %v579 = vunpack.c.l.b16 %v117
    %v580 = vunpack.c.h.b16 %v117
    %v581 = vunpack.c.l.b16 %v118
    %v582 = vunpack.c.h.b16 %v118
    %v583 = vunpack.c.l.b16 %v119
    %v584 = vunpack.c.h.b16 %v119
    %v585 = vunpack.c.l.b16 %v120
    %v586 = vunpack.c.h.b16 %v120
    %v587 = vunpack.c.l.b16 %v121
    %v588 = vunpack.c.h.b16 %v121
    %v589 = vunpack.c.l.b16 %v122
    %v590 = vunpack.c.h.b16 %v122
    %v591 = vunpack.c.l.b16 %v123
    %v592 = vunpack.c.h.b16 %v123
    %v593 = vunpack.c.l.b16 %v124
    %v594 = vunpack.c.h.b16 %v124
    %v595 = vunpack.c.l.b16 %v125
    %v596 = vunpack.c.h.b16 %v125
    %v597 = vunpack.c.l.b16 %v126
    %v598 = vunpack.c.h.b16 %v126
    %v599 = vunpack.c.l.b16 %v127
    %v600 = vunpack.c.h.b16 %v127
    %v601 = vunpack.c.l.b16 %v128
    %v602 = vunpack.c.h.b16 %v128
    %v603 = vunpack.c.l.b16 %v129
    %v604 = vunpack.c.h.b16 %v129
    %v605 = vunpack.c.l.b16 %v130
    %v606 = vunpack.c.h.b16 %v130
    %v607 = vunpack.c.l.b16 %v131
    %v608 = vunpack.c.h.b16 %v131
    %v609 = vunpack.c.l.b16 %v132
    %v610 = vunpack.c.h.b16 %v132
    %v611 = vunpack.c.l.b16 %v133
    %v612 = vunpack.c.h.b16 %v133
    %v613 = vunpack.c.l.b16 %v134
    %v614 = vunpack.c.h.b16 %v134
    %v615 = vunpack.c.l.b16 %v135
    %v616 = vunpack.c.h.b16 %v135
    %v617 = vunpack.c.l.b16 %v136
    %v618 = vunpack.c.h.b16 %v136
    %v619 = vunpack.c.l.b16 %v137
    %v620 = vunpack.c.h.b16 %v137
    %v621 = vunpack.c.l.b16 %v138
    %v622 = vunpack.c.h.b16 %v138
    %v623 = vunpack.c.l.b16 %v139
    %v624 = vunpack.c.h.b16 %v139
    %v625 = vunpack.c.l.b16 %v140
    %v626 = vunpack.c.h.b16 %v140
    %v627 = vunpack.c.l.b16 %v141
    %v628 = vunpack.c.h.b16 %v141
    %v629 = vunpack.c.l.b16 %v142
    %v630 = vunpack.c.h.b16 %v142
    %v631 = vunpack.c.l.b16 %v143
    %v632 = vunpack.c.h.b16 %v143
    %v633 = vunpack.c.l.b16 %v144
    %v634 = vunpack.c.h.b16 %v144
    %v635 = vunpack.c.l.b16 %v145
    %v636 = vunpack.c.h.b16 %v145
    %v637 = vunpack.c.l.b16 %v146
    %v638 = vunpack.c.h.b16 %v146
    %v639 = vunpack.c.l.b16 %v147
    %v640 = vunpack.c.h.b16 %v147
    %v641 = vunpack.c.l.b16 %v148
    %v642 = vunpack.c.h.b16 %v148
    %v643 = vunpack.c.l.b16 %v149
    %v644 = vunpack.c.h.b16 %v149
    %v645 = vunpack.c.l.b16 %v150
    %v646 = vunpack.c.h.b16 %v150
    %v647 = vunpack.c.l.b16 %v151
    %v648 = vunpack.c.h.b16 %v151
    %v649 = vunpack.c.l.b16 %v152
    %v650 = vunpack.c.h.b16 %v152
    %v651 = vunpack.c.l.b16 %v153
    %v652 = vunpack.c.h.b16 %v153
    %v653 = vunpack.c.l.b16 %v154
    %v654 = vunpack.c.h.b16 %v154
    %v655 = vunpack.c.l.b16 %v155
    %v656 = vunpack.c.h.b16 %v155
    %v657 = vunpack.c.l.b16 %v156
    %v658 = vunpack.c.h.b16 %v156
    %v659 = vunpack.c.l.b16 %v157
    %v660 = vunpack.c.h.b16 %v157
    %v661 = vunpack.c.l.b16 %v158
    %v662 = vunpack.c.h.b16 %v158
    %v663 = vunpack.c.l.b16 %v159
    %v664 = vunpack.c.h.b16 %v159
    %v665 = vunpack.c.l.b16 %v160
    %v666 = vunpack.c.h.b16 %v160
    %v667 = vunpack.c.l.b16 %v161
    %v668 = vunpack.c.h.b16 %v161
    %v669 = vunpack.c.l.b16 %v162
    %v670 = vunpack.c.h.b16 %v162
    %v671 = vunpack.c.l.b16 %v163
    %v672 = vunpack.c.h.b16 %v163
    %v673 = vunpack.c.l.b16 %v164
    %v674 = vunpack.c.h.b16 %v164
    %v675 = vunpack.c.l.b16 %v165
    %v676 = vunpack.c.h.b16 %v165
    %v677 = vunpack.c.l.b16 %v166
    %v678 = vunpack.c.h.b16 %v166
    %v679 = vunpack.c.l.b16 %v167
    %v680 = vunpack.c.h.b16 %v167
    %v681 = vunpack.c.l.b16 %v168
    %v682 = vunpack.c.h.b16 %v168
    %v683 = vunpack.c.l.b16 %v169
    %v684 = vunpack.c.h.b16 %v169
    %v685 = vunpack.c.l.b16 %v170
    %v686 = vunpack.c.h.b16 %v170
    %v687 = vunpack.c.l.b16 %v171
    %v688 = vunpack.c.h.b16 %v171
    %v689 = vunpack.c.l.b16 %v172
    %v690 = vunpack.c.h.b16 %v172
    %v691 = vunpack.c.l.b16 %v173
    %v692 = vunpack.c.h.b16 %v173
    %v693 = vunpack.c.l.b16 %v174
    %v694 = vunpack.c.h.b16 %v174
    %v695 = vunpack.c.l.b16 %v175
    %v696 = vunpack.c.h.b16 %v175
    %v697 = vunpack.c.l.b16 %v176
    %v698 = vunpack.c.h.b16 %v176
    %v699 = vunpack.c.l.b16 %v177
    %v700 = vunpack.c.h.b16 %v177
    %v701 = vunpack.c.l.b16 %v178
    %v702 = vunpack.c.h.b16 %v178
    %v703 = vunpack.c.l.b16 %v179
    %v704 = vunpack.c.h.b16 %v179
    %v705 = vunpack.c.l.b16 %v180
    %v706 = vunpack.c.h.b16 %v180
    %v707 = vunpack.c.l.b16 %v181
    %v708 = vunpack.c.h.b16 %v181
    %v709 = vunpack.c.l.b16 %v182
    %v710 = vunpack.c.h.b16 %v182
    %v711 = vunpack.c.l.b16 %v183
    %v712 = vunpack.c.h.b16 %v183
    %v713 = vunpack.c.l.b16 %v184
    %v714 = vunpack.c.h.b16 %v184
    %v715 = vunpack.c.l.b16 %v185
    %v716 = vunpack.c.h.b16 %v185
    %v717 = vunpack.c.l.b16 %v186
    %v718 = vunpack.c.h.b16 %v186
    %v719 = vunpack.c.l.b16 %v187
    %v720 = vunpack.c.h.b16 %v187
    %v721 = vunpack.c.l.b16 %v188
    %v722 = vunpack.c.h.b16 %v188
    %v723 = vunpack.c.l.b16 %v189
    %v724 = vunpack.c.h.b16 %v189
    %v725 = vunpack.c.l.b16 %v190
    %v726 = vunpack.c.h.b16 %v190
    %v727 = vunpack.c.l.b16 %v191
    %v728 = vunpack.c.h.b16 %v191
    %v729 = vunpack.c.l.b16 %v192
    %v730 = vunpack.c.h.b16 %v192
    %v731 = vunpack.c.l.b16 %v193
    %v732 = vunpack.c.h.b16 %v193
    %v733 = vunpack.c.l.b16 %v194
    %v734 = vunpack.c.h.b16 %v194
    %v735 = vunpack.c.l.b16 %v195
    %v736 = vunpack.c.h.b16 %v195
    %v737 = vunpack.c.l.b16 %v196
    %v738 = vunpack.c.h.b16 %v196
    %v739 = vunpack.c.l.b16 %v197
    %v740 = vunpack.c.h.b16 %v197
    %v741 = vunpack.c.l.b16 %v198
    %v742 = vunpack.c.h.b16 %v198
    %v743 = vunpack.c.l.b16 %v199
    %v744 = vunpack.c.h.b16 %v199
    %v745 = vunpack.c.l.b16 %v200
    %v746 = vunpack.c.h.b16 %v200
    %v747 = vunpack.c.l.b16 %v201
    %v748 = vunpack.c.h.b16 %v201
    %v749 = vunpack.c.l.b16 %v202
    %v750 = vunpack.c.h.b16 %v202
    %v751 = vunpack.c.l.b16 %v203
    %v752 = vunpack.c.h.b16 %v203
    %v753 = vunpack.c.l.b16 %v204
    %v754 = vunpack.c.h.b16 %v204
    %v755 = vunpack.c.l.b16 %v205
    %v756 = vunpack.c.h.b16 %v205
    %v757 = vunpack.c.l.b16 %v206
    %v758 = vunpack.c.h.b16 %v206
    %v759 = vunpack.c.l.b16 %v207
    %v760 = vunpack.c.h.b16 %v207
    %v761 = vunpack.c.l.b16 %v208
    %v762 = vunpack.c.h.b16 %v208
    %v763 = vpack.c.b16 %v511, %v507
    %v764 = vpack.c.b16 %v512, %v508
    %v765 = vpack.c.b16 %v513, %v509
    %v766 = vpack.c.b16 %v514, %v510
    %v767 = vpack.c.b16 %v519, %v515
    %v768 = vpack.c.b16 %v520, %v516
    %v769 = vpack.c.b16 %v521, %v517
    %v770 = vpack.c.b16 %v522, %v518
    %v771 = vpack.c.b16 %v527, %v523
    %v772 = vpack.c.b16 %v528, %v524
    %v773 = vpack.c.b16 %v529, %v525
    %v774 = vpack.c.b16 %v530, %v526
    %v775 = vpack.c.b16 %v535, %v531
    %v776 = vpack.c.b16 %v536, %v532
    %v777 = vpack.c.b16 %v537, %v533
    %v778 = vpack.c.b16 %v538, %v534
    %v779 = vpack.c.b16 %v543, %v539
    %v780 = vpack.c.b16 %v544, %v540
    %v781 = vpack.c.b16 %v545, %v541
    %v782 = vpack.c.b16 %v546, %v542
    %v783 = vpack.c.b16 %v551, %v547
    %v784 = vpack.c.b16 %v552, %v548
    %v785 = vpack.c.b16 %v553, %v549
    %v786 = vpack.c.b16 %v554, %v550
    %v787 = vpack.c.b16 %v559, %v555
    %v788 = vpack.c.b16 %v560, %v556
    %v789 = vpack.c.b16 %v561, %v557
    %v790 = vpack.c.b16 %v562, %v558
    %v791 = vpack.c.b16 %v567, %v563
    %v792 = vpack.c.b16 %v568, %v564
    %v793 = vpack.c.b16 %v569, %v565
    %v794 = vpack.c.b16 %v570, %v566
    %v795 = vpack.c.b16 %v575, %v571
    %v796 = vpack.c.b16 %v576, %v572
    %v797 = vpack.c.b16 %v577, %v573
    %v798 = vpack.c.b16 %v578, %v574
    %v799 = vpack.c.b16 %v583, %v579
    %v800 = vpack.c.b16 %v584, %v580
    %v801 = vpack.c.b16 %v585, %v581
    %v802 = vpack.c.b16 %v586, %v582
    %v803 = vpack.c.b16 %v591, %v587
    %v804 = vpack.c.b16 %v592, %v588
    %v805 = vpack.c.b16 %v593, %v589
    %v806 = vpack.c.b16 %v594, %v590
    %v807 = vpack.c.b16 %v599, %v595
    %v808 = vpack.c.b16 %v600, %v596
    %v809 = vpack.c.b16 %v601, %v597
    %v810 = vpack.c.b16 %v602, %v598
    %v811 = vpack.c.b16 %v607, %v603
    %v812 = vpack.c.b16 %v608, %v604
    %v813 = vpack.c.b16 %v609, %v605
    %v814 = vpack.c.b16 %v610, %v606
    %v815 = vpack.c.b16 %v615, %v611
    %v816 = vpack.c.b16 %v616, %v612
    %v817 = vpack.c.b16 %v617, %v613
    %v818 = vpack.c.b16 %v618, %v614
    %v819 = vpack.c.b16 %v623, %v619
    %v820 = vpack.c.b16 %v624, %v620
    %v821 = vpack.c.b16 %v625, %v621
    %v822 = vpack.c.b16 %v626, %v622
    %v823 = vpack.c.b16 %v631, %v627
    %v824 = vpack.c.b16 %v632, %v628
    %v825 = vpack.c.b16 %v633, %v629
    %v826 = vpack.c.b16 %v634, %v630
    %v827 = vpack.c.b16 %v639, %v635
    %v828 = vpack.c.b16 %v640, %v636
    %v829 = vpack.c.b16 %v641, %v637
    %v830 = vpack.c.b16 %v642, %v638
    %v831 = vpack.c.b16 %v647, %v643
    %v832 = vpack.c.b16 %v648, %v644
    %v833 = vpack.c.b16 %v649, %v645
    %v834 = vpack.c.b16 %v650, %v646
    %v835 = vpack.c.b16 %v655, %v651
    %v836 = vpack.c.b16 %v656, %v652
    %v837 = vpack.c.b16 %v657, %v653
    %v838 = vpack.c.b16 %v658, %v654
    %v839 = vpack.c.b16 %v663, %v659
    %v840 = vpack.c.b16 %v664, %v660
    %v841 = vpack.c.b16 %v665, %v661
    %v842 = vpack.c.b16 %v666, %v662
    %v843 = vpack.c.b16 %v671, %v667
    %v844 = vpack.c.b16 %v672, %v668
    %v845 = vpack.c.b16 %v673, %v669
    %v846 = vpack.c.b16 %v674, %v670
    %v847 = vpack.c.b16 %v679, %v675
    %v848 = vpack.c.b16 %v680, %v676
    %v849 = vpack.c.b16 %v681, %v677
    %v850 = vpack.c.b16 %v682, %v678
    %v851 = vpack.c.b16 %v687, %v683
    %v852 = vpack.c.b16 %v688, %v684
    %v853 = vpack.c.b16 %v689, %v685
    %v854 = vpack.c.b16 %v690, %v686
    %v855 = vpack.c.b16 %v695, %v691
    %v856 = vpack.c.b16 %v696, %v692
    %v857 = vpack.c.b16 %v697, %v693
    %v858 = vpack.c.b16 %v698, %v694
    %v859 = vpack.c.b16 %v703, %v699
    %v860 = vpack.c.b16 %v704, %v700
    %v861 = vpack.c.b16 %v705, %v701
    %v862 = vpack.c.b16 %v706, %v702
    %v863 = vpack.c.b16 %v711, %v707
    %v864 = vpack.c.b16 %v712, %v708
    %v865 = vpack.c.b16 %v713, %v709
    %v866 = vpack.c.b16 %v714, %v710
    %v867 = vpack.c.b16 %v719, %v715
    %v868 = vpack.c.b16 %v720, %v716
    %v869 = vpack.c.b16 %v721, %v717
    %v870 = vpack.c.b16 %v722, %v718
    %v871 = vpack.c.b16 %v727, %v723
    %v872 = vpack.c.b16 %v728, %v724
    %v873 = vpack.c.b16 %v729, %v725
    %v874 = vpack.c.b16 %v730, %v726
    %v875 = vpack.c.b16 %v735, %v731
    %v876 = vpack.c.b16 %v736, %v732
    %v877 = vpack.c.b16 %v737, %v733
    %v878 = vpack.c.b16 %v738, %v734
    %v879 = vpack.c.b16 %v743, %v739
    %v880 = vpack.c.b16 %v744, %v740
    %v881 = vpack.c.b16 %v745, %v741
    %v882 = vpack.c.b16 %v746, %v742
    %v883 = vpack.c.b16 %v751, %v747
    %v884 = vpack.c.b16 %v752, %v748
    %v885 = vpack.c.b16 %v753, %v749
    %v886 = vpack.c.b16 %v754, %v750
    %v887 = vpack.c.b16 %v759, %v755
    %v888 = vpack.c.b16 %v760, %v756
    %v889 = vpack.c.b16 %v761, %v757
    %v890 = vpack.c.b16 %v762, %v758
    %1019 = vmatpush.bf16.msra.mxu0 %v791
    %1020 = vmatpush.bf16.msra.mxu0 %v787
    %1021 = vmatpush.bf16.msra.mxu0 %v783
    %1022 = vmatpush.bf16.msra.mxu0 %v779
    %1023 = vmatpush.bf16.msra.mxu0 %v775
    %1024 = vmatpush.bf16.msra.mxu0 %v771
    %1025 = vmatpush.bf16.msra.mxu0 %v767
    %1026 = vmatpush.bf16.msra.mxu0 %v763
    %1027 = vmatmul.bf16.gmra.mxu0 %v315
    %v1028 = vpop.f32.mrf.mxu0
    %v1029 = vadd.f32 %v211, %v1028
    %v1030 = vpop.f32.mrf.mxu0
    %v1031 = vadd.f32 %v211, %v1030
    %1032 = vmatmul.bf16.gmra.mxu0 %v319
    %v1033 = vpop.f32.mrf.mxu0
    %v1034 = vadd.f32 %v211, %v1033
    %v1035 = vpop.f32.mrf.mxu0
    %v1036 = vadd.f32 %v211, %v1035
    %1037 = vmatmul.bf16.gmra.mxu0 %v323
    %v1038 = vpop.f32.mrf.mxu0
    %v1039 = vadd.f32 %v211, %v1038
    %v1040 = vpop.f32.mrf.mxu0
    %v1041 = vadd.f32 %v211, %v1040
    %1042 = vmatmul.bf16.gmra.mxu0 %v327
    %v1043 = vpop.f32.mrf.mxu0
    %v1044 = vadd.f32 %v211, %v1043
    %v1045 = vpop.f32.mrf.mxu0
    %v1046 = vadd.f32 %v211, %v1045
    %1047 = vmatmul.bf16.gmra.mxu0 %v331
    %v1048 = vpop.f32.mrf.mxu0
    %v1049 = vadd.f32 %v211, %v1048
    %v1050 = vpop.f32.mrf.mxu0
    %v1051 = vadd.f32 %v211, %v1050
    %1052 = vmatmul.bf16.gmra.mxu0 %v335
    %v1053 = vpop.f32.mrf.mxu0
    %v1054 = vadd.f32 %v211, %v1053
    %v1055 = vpop.f32.mrf.mxu0
    %v1056 = vadd.f32 %v211, %v1055
    %1057 = vmatmul.bf16.gmra.mxu0 %v339
    %v1058 = vpop.f32.mrf.mxu0
    %v1059 = vadd.f32 %v211, %v1058
    %v1060 = vpop.f32.mrf.mxu0
    %v1061 = vadd.f32 %v211, %v1060
    %1062 = vmatmul.bf16.gmra.mxu0 %v343
    %v1063 = vpop.f32.mrf.mxu0
    %v1064 = vadd.f32 %v211, %v1063
    %v1065 = vpop.f32.mrf.mxu0
    %v1066 = vadd.f32 %v211, %v1065
    %1067 = vdwg.mxu0
    %1068 = vmatpush.bf16.msra.mxu0 %v823
    %1069 = vmatpush.bf16.msra.mxu0 %v819
    %1070 = vmatpush.bf16.msra.mxu0 %v815
    %1071 = vmatpush.bf16.msra.mxu0 %v811
    %1072 = vmatpush.bf16.msra.mxu0 %v807
    %1073 = vmatpush.bf16.msra.mxu0 %v803
    %1074 = vmatpush.bf16.msra.mxu0 %v799
    %1075 = vmatpush.bf16.msra.mxu0 %v795
    %1076 = vmatmul.bf16.gmra.mxu0 %v316
    %v1077 = vpop.f32.mrf.mxu0
    %v1078 = vadd.f32 %v1029, %v1077
    %v1079 = vpop.f32.mrf.mxu0
    %v1080 = vadd.f32 %v1031, %v1079
    %1081 = vmatmul.bf16.gmra.mxu0 %v320
    %v1082 = vpop.f32.mrf.mxu0
    %v1083 = vadd.f32 %v1034, %v1082
    %v1084 = vpop.f32.mrf.mxu0
    %v1085 = vadd.f32 %v1036, %v1084
    %1086 = vmatmul.bf16.gmra.mxu0 %v324
    %v1087 = vpop.f32.mrf.mxu0
    %v1088 = vadd.f32 %v1039, %v1087
    %v1089 = vpop.f32.mrf.mxu0
    %v1090 = vadd.f32 %v1041, %v1089
    %1091 = vmatmul.bf16.gmra.mxu0 %v328
    %v1092 = vpop.f32.mrf.mxu0
    %v1093 = vadd.f32 %v1044, %v1092
    %v1094 = vpop.f32.mrf.mxu0
    %v1095 = vadd.f32 %v1046, %v1094
    %1096 = vmatmul.bf16.gmra.mxu0 %v332
    %v1097 = vpop.f32.mrf.mxu0
    %v1098 = vadd.f32 %v1049, %v1097
    %v1099 = vpop.f32.mrf.mxu0
    %v1100 = vadd.f32 %v1051, %v1099
    %1101 = vmatmul.bf16.gmra.mxu0 %v336
    %v1102 = vpop.f32.mrf.mxu0
    %v1103 = vadd.f32 %v1054, %v1102
    %v1104 = vpop.f32.mrf.mxu0
    %v1105 = vadd.f32 %v1056, %v1104
    %1106 = vmatmul.bf16.gmra.mxu0 %v340
    %v1107 = vpop.f32.mrf.mxu0
    %v1108 = vadd.f32 %v1059, %v1107
    %v1109 = vpop.f32.mrf.mxu0
    %v1110 = vadd.f32 %v1061, %v1109
    %1111 = vmatmul.bf16.gmra.mxu0 %v344
    %v1112 = vpop.f32.mrf.mxu0
    %v1113 = vadd.f32 %v1064, %v1112
    %v1114 = vpop.f32.mrf.mxu0
    %v1115 = vadd.f32 %v1066, %v1114
    %1116 = vdwg.mxu0
    %1117 = vmatpush.bf16.msra.mxu0 %v855
    %1118 = vmatpush.bf16.msra.mxu0 %v851
    %1119 = vmatpush.bf16.msra.mxu0 %v847
    %1120 = vmatpush.bf16.msra.mxu0 %v843
    %1121 = vmatpush.bf16.msra.mxu0 %v839
    %1122 = vmatpush.bf16.msra.mxu0 %v835
    %1123 = vmatpush.bf16.msra.mxu0 %v831
    %1124 = vmatpush.bf16.msra.mxu0 %v827
    %1125 = vmatmul.bf16.gmra.mxu0 %v317
    %v1126 = vpop.f32.mrf.mxu0
    %v1127 = vadd.f32 %v1078, %v1126
    %v1128 = vpop.f32.mrf.mxu0
    %v1129 = vadd.f32 %v1080, %v1128
    %1130 = vmatmul.bf16.gmra.mxu0 %v321
    %v1131 = vpop.f32.mrf.mxu0
    %v1132 = vadd.f32 %v1083, %v1131
    %v1133 = vpop.f32.mrf.mxu0
    %v1134 = vadd.f32 %v1085, %v1133
    %1135 = vmatmul.bf16.gmra.mxu0 %v325
    %v1136 = vpop.f32.mrf.mxu0
    %v1137 = vadd.f32 %v1088, %v1136
    %v1138 = vpop.f32.mrf.mxu0
    %v1139 = vadd.f32 %v1090, %v1138
    %1140 = vmatmul.bf16.gmra.mxu0 %v329
    %v1141 = vpop.f32.mrf.mxu0
    %v1142 = vadd.f32 %v1093, %v1141
    %v1143 = vpop.f32.mrf.mxu0
    %v1144 = vadd.f32 %v1095, %v1143
    %1145 = vmatmul.bf16.gmra.mxu0 %v333
    %v1146 = vpop.f32.mrf.mxu0
    %v1147 = vadd.f32 %v1098, %v1146
    %v1148 = vpop.f32.mrf.mxu0
    %v1149 = vadd.f32 %v1100, %v1148
    %1150 = vmatmul.bf16.gmra.mxu0 %v337
    %v1151 = vpop.f32.mrf.mxu0
    %v1152 = vadd.f32 %v1103, %v1151
    %v1153 = vpop.f32.mrf.mxu0
    %v1154 = vadd.f32 %v1105, %v1153
    %1155 = vmatmul.bf16.gmra.mxu0 %v341
    %v1156 = vpop.f32.mrf.mxu0
    %v1157 = vadd.f32 %v1108, %v1156
    %v1158 = vpop.f32.mrf.mxu0
    %v1159 = vadd.f32 %v1110, %v1158
    %1160 = vmatmul.bf16.gmra.mxu0 %v345
    %v1161 = vpop.f32.mrf.mxu0
    %v1162 = vadd.f32 %v1113, %v1161
    %v1163 = vpop.f32.mrf.mxu0
    %v1164 = vadd.f32 %v1115, %v1163
    %1165 = vdwg.mxu0
    %1166 = vmatpush.bf16.msra.mxu0 %v887
    %1167 = vmatpush.bf16.msra.mxu0 %v883
    %1168 = vmatpush.bf16.msra.mxu0 %v879
    %1169 = vmatpush.bf16.msra.mxu0 %v875
    %1170 = vmatpush.bf16.msra.mxu0 %v871
    %1171 = vmatpush.bf16.msra.mxu0 %v867
    %1172 = vmatpush.bf16.msra.mxu0 %v863
    %1173 = vmatpush.bf16.msra.mxu0 %v859
    %1174 = vmatmul.bf16.gmra.mxu0 %v318
    %v1175 = vpop.f32.mrf.mxu0
    %v1176 = vadd.f32 %v1127, %v1175
    %v1177 = vpop.f32.mrf.mxu0
    %v1178 = vadd.f32 %v1129, %v1177
    %1179 = vmatmul.bf16.gmra.mxu0 %v322
    %v1180 = vpop.f32.mrf.mxu0
    %v1181 = vadd.f32 %v1132, %v1180
    %v1182 = vpop.f32.mrf.mxu0
    %v1183 = vadd.f32 %v1134, %v1182
    %1184 = vmatmul.bf16.gmra.mxu0 %v326
    %v1185 = vpop.f32.mrf.mxu0
    %v1186 = vadd.f32 %v1137, %v1185
    %v1187 = vpop.f32.mrf.mxu0
    %v1188 = vadd.f32 %v1139, %v1187
    %1189 = vmatmul.bf16.gmra.mxu0 %v330
    %v1190 = vpop.f32.mrf.mxu0
    %v1191 = vadd.f32 %v1142, %v1190
    %v1192 = vpop.f32.mrf.mxu0
    %v1193 = vadd.f32 %v1144, %v1192
    %1194 = vmatmul.bf16.gmra.mxu0 %v334
    %v1195 = vpop.f32.mrf.mxu0
    %v1196 = vadd.f32 %v1147, %v1195
    %v1197 = vpop.f32.mrf.mxu0
    %v1198 = vadd.f32 %v1149, %v1197
    %1199 = vmatmul.bf16.gmra.mxu0 %v338
    %v1200 = vpop.f32.mrf.mxu0
    %v1201 = vadd.f32 %v1152, %v1200
    %v1202 = vpop.f32.mrf.mxu0
    %v1203 = vadd.f32 %v1154, %v1202
    %1204 = vmatmul.bf16.gmra.mxu0 %v342
    %v1205 = vpop.f32.mrf.mxu0
    %v1206 = vadd.f32 %v1157, %v1205
    %v1207 = vpop.f32.mrf.mxu0
    %v1208 = vadd.f32 %v1159, %v1207
    %1209 = vmatmul.bf16.gmra.mxu0 %v346
    %v1210 = vpop.f32.mrf.mxu0
    %v1211 = vadd.f32 %v1162, %v1210
    %v1212 = vpop.f32.mrf.mxu0
    %v1213 = vadd.f32 %v1164, %v1212
    %1214 = vdwg.mxu0
    %1215 = vmatpush.bf16.msra.mxu0 %v792
    %1216 = vmatpush.bf16.msra.mxu0 %v788
    %1217 = vmatpush.bf16.msra.mxu0 %v784
    %1218 = vmatpush.bf16.msra.mxu0 %v780
    %1219 = vmatpush.bf16.msra.mxu0 %v776
    %1220 = vmatpush.bf16.msra.mxu0 %v772
    %1221 = vmatpush.bf16.msra.mxu0 %v768
    %1222 = vmatpush.bf16.msra.mxu0 %v764
    %1223 = vmatmul.bf16.gmra.mxu0 %v315
    %v1224 = vpop.f32.mrf.mxu0
    %v1225 = vadd.f32 %v212, %v1224
    %v1226 = vpop.f32.mrf.mxu0
    %v1227 = vadd.f32 %v212, %v1226
    %1228 = vmatmul.bf16.gmra.mxu0 %v319
    %v1229 = vpop.f32.mrf.mxu0
    %v1230 = vadd.f32 %v212, %v1229
    %v1231 = vpop.f32.mrf.mxu0
    %v1232 = vadd.f32 %v212, %v1231
    %1233 = vmatmul.bf16.gmra.mxu0 %v323
    %v1234 = vpop.f32.mrf.mxu0
    %v1235 = vadd.f32 %v212, %v1234
    %v1236 = vpop.f32.mrf.mxu0
    %v1237 = vadd.f32 %v212, %v1236
    %1238 = vmatmul.bf16.gmra.mxu0 %v327
    %v1239 = vpop.f32.mrf.mxu0
    %v1240 = vadd.f32 %v212, %v1239
    %v1241 = vpop.f32.mrf.mxu0
    %v1242 = vadd.f32 %v212, %v1241
    %1243 = vmatmul.bf16.gmra.mxu0 %v331
    %v1244 = vpop.f32.mrf.mxu0
    %v1245 = vadd.f32 %v212, %v1244
    %v1246 = vpop.f32.mrf.mxu0
    %v1247 = vadd.f32 %v212, %v1246
    %1248 = vmatmul.bf16.gmra.mxu0 %v335
    %v1249 = vpop.f32.mrf.mxu0
    %v1250 = vadd.f32 %v212, %v1249
    %v1251 = vpop.f32.mrf.mxu0
    %v1252 = vadd.f32 %v212, %v1251
    %1253 = vmatmul.bf16.gmra.mxu0 %v339
    %v1254 = vpop.f32.mrf.mxu0
    %v1255 = vadd.f32 %v212, %v1254
    %v1256 = vpop.f32.mrf.mxu0
    %v1257 = vadd.f32 %v212, %v1256
    %1258 = vmatmul.bf16.gmra.mxu0 %v343
    %v1259 = vpop.f32.mrf.mxu0
    %v1260 = vadd.f32 %v212, %v1259
    %v1261 = vpop.f32.mrf.mxu0
    %v1262 = vadd.f32 %v212, %v1261
    %1263 = vdwg.mxu0
    %1264 = vmatpush.bf16.msra.mxu0 %v824
    %1265 = vmatpush.bf16.msra.mxu0 %v820
    %1266 = vmatpush.bf16.msra.mxu0 %v816
    %1267 = vmatpush.bf16.msra.mxu0 %v812
    %1268 = vmatpush.bf16.msra.mxu0 %v808
    %1269 = vmatpush.bf16.msra.mxu0 %v804
    %1270 = vmatpush.bf16.msra.mxu0 %v800
    %1271 = vmatpush.bf16.msra.mxu0 %v796
    %1272 = vmatmul.bf16.gmra.mxu0 %v316
    %v1273 = vpop.f32.mrf.mxu0
    %v1274 = vadd.f32 %v1225, %v1273
    %v1275 = vpop.f32.mrf.mxu0
    %v1276 = vadd.f32 %v1227, %v1275
    %1277 = vmatmul.bf16.gmra.mxu0 %v320
    %v1278 = vpop.f32.mrf.mxu0
    %v1279 = vadd.f32 %v1230, %v1278
    %v1280 = vpop.f32.mrf.mxu0
    %v1281 = vadd.f32 %v1232, %v1280
    %1282 = vmatmul.bf16.gmra.mxu0 %v324
    %v1283 = vpop.f32.mrf.mxu0
    %v1284 = vadd.f32 %v1235, %v1283
    %v1285 = vpop.f32.mrf.mxu0
    %v1286 = vadd.f32 %v1237, %v1285
    %1287 = vmatmul.bf16.gmra.mxu0 %v328
    %v1288 = vpop.f32.mrf.mxu0
    %v1289 = vadd.f32 %v1240, %v1288
    %v1290 = vpop.f32.mrf.mxu0
    %v1291 = vadd.f32 %v1242, %v1290
    %1292 = vmatmul.bf16.gmra.mxu0 %v332
    %v1293 = vpop.f32.mrf.mxu0
    %v1294 = vadd.f32 %v1245, %v1293
    %v1295 = vpop.f32.mrf.mxu0
    %v1296 = vadd.f32 %v1247, %v1295
    %1297 = vmatmul.bf16.gmra.mxu0 %v336
    %v1298 = vpop.f32.mrf.mxu0
    %v1299 = vadd.f32 %v1250, %v1298
    %v1300 = vpop.f32.mrf.mxu0
    %v1301 = vadd.f32 %v1252, %v1300
    %1302 = vmatmul.bf16.gmra.mxu0 %v340
    %v1303 = vpop.f32.mrf.mxu0
    %v1304 = vadd.f32 %v1255, %v1303
    %v1305 = vpop.f32.mrf.mxu0
    %v1306 = vadd.f32 %v1257, %v1305
    %1307 = vmatmul.bf16.gmra.mxu0 %v344
    %v1308 = vpop.f32.mrf.mxu0
    %v1309 = vadd.f32 %v1260, %v1308
    %v1310 = vpop.f32.mrf.mxu0
    %v1311 = vadd.f32 %v1262, %v1310
    %1312 = vdwg.mxu0
    %1313 = vmatpush.bf16.msra.mxu0 %v856
    %1314 = vmatpush.bf16.msra.mxu0 %v852
    %1315 = vmatpush.bf16.msra.mxu0 %v848
    %1316 = vmatpush.bf16.msra.mxu0 %v844
    %1317 = vmatpush.bf16.msra.mxu0 %v840
    %1318 = vmatpush.bf16.msra.mxu0 %v836
    %1319 = vmatpush.bf16.msra.mxu0 %v832
    %1320 = vmatpush.bf16.msra.mxu0 %v828
    %1321 = vmatmul.bf16.gmra.mxu0 %v317
    %v1322 = vpop.f32.mrf.mxu0
    %v1323 = vadd.f32 %v1274, %v1322
    %v1324 = vpop.f32.mrf.mxu0
    %v1325 = vadd.f32 %v1276, %v1324
    %1326 = vmatmul.bf16.gmra.mxu0 %v321
    %v1327 = vpop.f32.mrf.mxu0
    %v1328 = vadd.f32 %v1279, %v1327
    %v1329 = vpop.f32.mrf.mxu0
    %v1330 = vadd.f32 %v1281, %v1329
    %1331 = vmatmul.bf16.gmra.mxu0 %v325
    %v1332 = vpop.f32.mrf.mxu0
    %v1333 = vadd.f32 %v1284, %v1332
    %v1334 = vpop.f32.mrf.mxu0
    %v1335 = vadd.f32 %v1286, %v1334
    %1336 = vmatmul.bf16.gmra.mxu0 %v329
    %v1337 = vpop.f32.mrf.mxu0
    %v1338 = vadd.f32 %v1289, %v1337
    %v1339 = vpop.f32.mrf.mxu0
    %v1340 = vadd.f32 %v1291, %v1339
    %1341 = vmatmul.bf16.gmra.mxu0 %v333
    %v1342 = vpop.f32.mrf.mxu0
    %v1343 = vadd.f32 %v1294, %v1342
    %v1344 = vpop.f32.mrf.mxu0
    %v1345 = vadd.f32 %v1296, %v1344
    %1346 = vmatmul.bf16.gmra.mxu0 %v337
    %v1347 = vpop.f32.mrf.mxu0
    %v1348 = vadd.f32 %v1299, %v1347
    %v1349 = vpop.f32.mrf.mxu0
    %v1350 = vadd.f32 %v1301, %v1349
    %1351 = vmatmul.bf16.gmra.mxu0 %v341
    %v1352 = vpop.f32.mrf.mxu0
    %v1353 = vadd.f32 %v1304, %v1352
    %v1354 = vpop.f32.mrf.mxu0
    %v1355 = vadd.f32 %v1306, %v1354
    %1356 = vmatmul.bf16.gmra.mxu0 %v345
    %v1357 = vpop.f32.mrf.mxu0
    %v1358 = vadd.f32 %v1309, %v1357
    %v1359 = vpop.f32.mrf.mxu0
    %v1360 = vadd.f32 %v1311, %v1359
    %1361 = vdwg.mxu0
    %1362 = vmatpush.bf16.msra.mxu0 %v888
    %1363 = vmatpush.bf16.msra.mxu0 %v884
    %1364 = vmatpush.bf16.msra.mxu0 %v880
    %1365 = vmatpush.bf16.msra.mxu0 %v876
    %1366 = vmatpush.bf16.msra.mxu0 %v872
    %1367 = vmatpush.bf16.msra.mxu0 %v868
    %1368 = vmatpush.bf16.msra.mxu0 %v864
    %1369 = vmatpush.bf16.msra.mxu0 %v860
    %1370 = vmatmul.bf16.gmra.mxu0 %v318
    %v1371 = vpop.f32.mrf.mxu0
    %v1372 = vadd.f32 %v1323, %v1371
    %v1373 = vpop.f32.mrf.mxu0
    %v1374 = vadd.f32 %v1325, %v1373
    %1375 = vmatmul.bf16.gmra.mxu0 %v322
    %v1376 = vpop.f32.mrf.mxu0
    %v1377 = vadd.f32 %v1328, %v1376
    %v1378 = vpop.f32.mrf.mxu0
    %v1379 = vadd.f32 %v1330, %v1378
    %1380 = vmatmul.bf16.gmra.mxu0 %v326
    %v1381 = vpop.f32.mrf.mxu0
    %v1382 = vadd.f32 %v1333, %v1381
    %v1383 = vpop.f32.mrf.mxu0
    %v1384 = vadd.f32 %v1335, %v1383
    %1385 = vmatmul.bf16.gmra.mxu0 %v330
    %v1386 = vpop.f32.mrf.mxu0
    %v1387 = vadd.f32 %v1338, %v1386
    %v1388 = vpop.f32.mrf.mxu0
    %v1389 = vadd.f32 %v1340, %v1388
    %1390 = vmatmul.bf16.gmra.mxu0 %v334
    %v1391 = vpop.f32.mrf.mxu0
    %v1392 = vadd.f32 %v1343, %v1391
    %v1393 = vpop.f32.mrf.mxu0
    %v1394 = vadd.f32 %v1345, %v1393
    %1395 = vmatmul.bf16.gmra.mxu0 %v338
    %v1396 = vpop.f32.mrf.mxu0
    %v1397 = vadd.f32 %v1348, %v1396
    %v1398 = vpop.f32.mrf.mxu0
    %v1399 = vadd.f32 %v1350, %v1398
    %1400 = vmatmul.bf16.gmra.mxu0 %v342
    %v1401 = vpop.f32.mrf.mxu0
    %v1402 = vadd.f32 %v1353, %v1401
    %v1403 = vpop.f32.mrf.mxu0
    %v1404 = vadd.f32 %v1355, %v1403
    %1405 = vmatmul.bf16.gmra.mxu0 %v346
    %v1406 = vpop.f32.mrf.mxu0
    %v1407 = vadd.f32 %v1358, %v1406
    %v1408 = vpop.f32.mrf.mxu0
    %v1409 = vadd.f32 %v1360, %v1408
    %1410 = vdwg.mxu0
    %1411 = vmatpush.bf16.msra.mxu0 %v793
    %1412 = vmatpush.bf16.msra.mxu0 %v789
    %1413 = vmatpush.bf16.msra.mxu0 %v785
    %1414 = vmatpush.bf16.msra.mxu0 %v781
    %1415 = vmatpush.bf16.msra.mxu0 %v777
    %1416 = vmatpush.bf16.msra.mxu0 %v773
    %1417 = vmatpush.bf16.msra.mxu0 %v769
    %1418 = vmatpush.bf16.msra.mxu0 %v765
    %1419 = vmatmul.bf16.gmra.mxu0 %v315
    %v1420 = vpop.f32.mrf.mxu0
    %v1421 = vadd.f32 %v213, %v1420
    %v1422 = vpop.f32.mrf.mxu0
    %v1423 = vadd.f32 %v213, %v1422
    %1424 = vmatmul.bf16.gmra.mxu0 %v319
    %v1425 = vpop.f32.mrf.mxu0
    %v1426 = vadd.f32 %v213, %v1425
    %v1427 = vpop.f32.mrf.mxu0
    %v1428 = vadd.f32 %v213, %v1427
    %1429 = vmatmul.bf16.gmra.mxu0 %v323
    %v1430 = vpop.f32.mrf.mxu0
    %v1431 = vadd.f32 %v213, %v1430
    %v1432 = vpop.f32.mrf.mxu0
    %v1433 = vadd.f32 %v213, %v1432
    %1434 = vmatmul.bf16.gmra.mxu0 %v327
    %v1435 = vpop.f32.mrf.mxu0
    %v1436 = vadd.f32 %v213, %v1435
    %v1437 = vpop.f32.mrf.mxu0
    %v1438 = vadd.f32 %v213, %v1437
    %1439 = vmatmul.bf16.gmra.mxu0 %v331
    %v1440 = vpop.f32.mrf.mxu0
    %v1441 = vadd.f32 %v213, %v1440
    %v1442 = vpop.f32.mrf.mxu0
    %v1443 = vadd.f32 %v213, %v1442
    %1444 = vmatmul.bf16.gmra.mxu0 %v335
    %v1445 = vpop.f32.mrf.mxu0
    %v1446 = vadd.f32 %v213, %v1445
    %v1447 = vpop.f32.mrf.mxu0
    %v1448 = vadd.f32 %v213, %v1447
    %1449 = vmatmul.bf16.gmra.mxu0 %v339
    %v1450 = vpop.f32.mrf.mxu0
    %v1451 = vadd.f32 %v213, %v1450
    %v1452 = vpop.f32.mrf.mxu0
    %v1453 = vadd.f32 %v213, %v1452
    %1454 = vmatmul.bf16.gmra.mxu0 %v343
    %v1455 = vpop.f32.mrf.mxu0
    %v1456 = vadd.f32 %v213, %v1455
    %v1457 = vpop.f32.mrf.mxu0
    %v1458 = vadd.f32 %v213, %v1457
    %1459 = vdwg.mxu0
    %1460 = vmatpush.bf16.msra.mxu0 %v825
    %1461 = vmatpush.bf16.msra.mxu0 %v821
    %1462 = vmatpush.bf16.msra.mxu0 %v817
    %1463 = vmatpush.bf16.msra.mxu0 %v813
    %1464 = vmatpush.bf16.msra.mxu0 %v809
    %1465 = vmatpush.bf16.msra.mxu0 %v805
    %1466 = vmatpush.bf16.msra.mxu0 %v801
    %1467 = vmatpush.bf16.msra.mxu0 %v797
    %1468 = vmatmul.bf16.gmra.mxu0 %v316
    %v1469 = vpop.f32.mrf.mxu0
    %v1470 = vadd.f32 %v1421, %v1469
    %v1471 = vpop.f32.mrf.mxu0
    %v1472 = vadd.f32 %v1423, %v1471
    %1473 = vmatmul.bf16.gmra.mxu0 %v320
    %v1474 = vpop.f32.mrf.mxu0
    %v1475 = vadd.f32 %v1426, %v1474
    %v1476 = vpop.f32.mrf.mxu0
    %v1477 = vadd.f32 %v1428, %v1476
    %1478 = vmatmul.bf16.gmra.mxu0 %v324
    %v1479 = vpop.f32.mrf.mxu0
    %v1480 = vadd.f32 %v1431, %v1479
    %v1481 = vpop.f32.mrf.mxu0
    %v1482 = vadd.f32 %v1433, %v1481
    %1483 = vmatmul.bf16.gmra.mxu0 %v328
    %v1484 = vpop.f32.mrf.mxu0
    %v1485 = vadd.f32 %v1436, %v1484
    %v1486 = vpop.f32.mrf.mxu0
    %v1487 = vadd.f32 %v1438, %v1486
    %1488 = vmatmul.bf16.gmra.mxu0 %v332
    %v1489 = vpop.f32.mrf.mxu0
    %v1490 = vadd.f32 %v1441, %v1489
    %v1491 = vpop.f32.mrf.mxu0
    %v1492 = vadd.f32 %v1443, %v1491
    %1493 = vmatmul.bf16.gmra.mxu0 %v336
    %v1494 = vpop.f32.mrf.mxu0
    %v1495 = vadd.f32 %v1446, %v1494
    %v1496 = vpop.f32.mrf.mxu0
    %v1497 = vadd.f32 %v1448, %v1496
    %1498 = vmatmul.bf16.gmra.mxu0 %v340
    %v1499 = vpop.f32.mrf.mxu0
    %v1500 = vadd.f32 %v1451, %v1499
    %v1501 = vpop.f32.mrf.mxu0
    %v1502 = vadd.f32 %v1453, %v1501
    %1503 = vmatmul.bf16.gmra.mxu0 %v344
    %v1504 = vpop.f32.mrf.mxu0
    %v1505 = vadd.f32 %v1456, %v1504
    %v1506 = vpop.f32.mrf.mxu0
    %v1507 = vadd.f32 %v1458, %v1506
    %1508 = vdwg.mxu0
    %1509 = vmatpush.bf16.msra.mxu0 %v857
    %1510 = vmatpush.bf16.msra.mxu0 %v853
    %1511 = vmatpush.bf16.msra.mxu0 %v849
    %1512 = vmatpush.bf16.msra.mxu0 %v845
    %1513 = vmatpush.bf16.msra.mxu0 %v841
    %1514 = vmatpush.bf16.msra.mxu0 %v837
    %1515 = vmatpush.bf16.msra.mxu0 %v833
    %1516 = vmatpush.bf16.msra.mxu0 %v829
    %1517 = vmatmul.bf16.gmra.mxu0 %v317
    %v1518 = vpop.f32.mrf.mxu0
    %v1519 = vadd.f32 %v1470, %v1518
    %v1520 = vpop.f32.mrf.mxu0
    %v1521 = vadd.f32 %v1472, %v1520
    %1522 = vmatmul.bf16.gmra.mxu0 %v321
    %v1523 = vpop.f32.mrf.mxu0
    %v1524 = vadd.f32 %v1475, %v1523
    %v1525 = vpop.f32.mrf.mxu0
    %v1526 = vadd.f32 %v1477, %v1525
    %1527 = vmatmul.bf16.gmra.mxu0 %v325
    %v1528 = vpop.f32.mrf.mxu0
    %v1529 = vadd.f32 %v1480, %v1528
    %v1530 = vpop.f32.mrf.mxu0
    %v1531 = vadd.f32 %v1482, %v1530
    %1532 = vmatmul.bf16.gmra.mxu0 %v329
    %v1533 = vpop.f32.mrf.mxu0
    %v1534 = vadd.f32 %v1485, %v1533
    %v1535 = vpop.f32.mrf.mxu0
    %v1536 = vadd.f32 %v1487, %v1535
    %1537 = vmatmul.bf16.gmra.mxu0 %v333
    %v1538 = vpop.f32.mrf.mxu0
    %v1539 = vadd.f32 %v1490, %v1538
    %v1540 = vpop.f32.mrf.mxu0
    %v1541 = vadd.f32 %v1492, %v1540
    %1542 = vmatmul.bf16.gmra.mxu0 %v337
    %v1543 = vpop.f32.mrf.mxu0
    %v1544 = vadd.f32 %v1495, %v1543
    %v1545 = vpop.f32.mrf.mxu0
    %v1546 = vadd.f32 %v1497, %v1545
    %1547 = vmatmul.bf16.gmra.mxu0 %v341
    %v1548 = vpop.f32.mrf.mxu0
    %v1549 = vadd.f32 %v1500, %v1548
    %v1550 = vpop.f32.mrf.mxu0
    %v1551 = vadd.f32 %v1502, %v1550
    %1552 = vmatmul.bf16.gmra.mxu0 %v345
    %v1553 = vpop.f32.mrf.mxu0
    %v1554 = vadd.f32 %v1505, %v1553
    %v1555 = vpop.f32.mrf.mxu0
    %v1556 = vadd.f32 %v1507, %v1555
    %1557 = vdwg.mxu0
    %1558 = vmatpush.bf16.msra.mxu0 %v889
    %1559 = vmatpush.bf16.msra.mxu0 %v885
    %1560 = vmatpush.bf16.msra.mxu0 %v881
    %1561 = vmatpush.bf16.msra.mxu0 %v877
    %1562 = vmatpush.bf16.msra.mxu0 %v873
    %1563 = vmatpush.bf16.msra.mxu0 %v869
    %1564 = vmatpush.bf16.msra.mxu0 %v865
    %1565 = vmatpush.bf16.msra.mxu0 %v861
    %1566 = vmatmul.bf16.gmra.mxu0 %v318
    %v1567 = vpop.f32.mrf.mxu0
    %v1568 = vadd.f32 %v1519, %v1567
    %v1569 = vpop.f32.mrf.mxu0
    %v1570 = vadd.f32 %v1521, %v1569
    %1571 = vmatmul.bf16.gmra.mxu0 %v322
    %v1572 = vpop.f32.mrf.mxu0
    %v1573 = vadd.f32 %v1524, %v1572
    %v1574 = vpop.f32.mrf.mxu0
    %v1575 = vadd.f32 %v1526, %v1574
    %1576 = vmatmul.bf16.gmra.mxu0 %v326
    %v1577 = vpop.f32.mrf.mxu0
    %v1578 = vadd.f32 %v1529, %v1577
    %v1579 = vpop.f32.mrf.mxu0
    %v1580 = vadd.f32 %v1531, %v1579
    %1581 = vmatmul.bf16.gmra.mxu0 %v330
    %v1582 = vpop.f32.mrf.mxu0
    %v1583 = vadd.f32 %v1534, %v1582
    %v1584 = vpop.f32.mrf.mxu0
    %v1585 = vadd.f32 %v1536, %v1584
    %1586 = vmatmul.bf16.gmra.mxu0 %v334
    %v1587 = vpop.f32.mrf.mxu0
    %v1588 = vadd.f32 %v1539, %v1587
    %v1589 = vpop.f32.mrf.mxu0
    %v1590 = vadd.f32 %v1541, %v1589
    %1591 = vmatmul.bf16.gmra.mxu0 %v338
    %v1592 = vpop.f32.mrf.mxu0
    %v1593 = vadd.f32 %v1544, %v1592
    %v1594 = vpop.f32.mrf.mxu0
    %v1595 = vadd.f32 %v1546, %v1594
    %1596 = vmatmul.bf16.gmra.mxu0 %v342
    %v1597 = vpop.f32.mrf.mxu0
    %v1598 = vadd.f32 %v1549, %v1597
    %v1599 = vpop.f32.mrf.mxu0
    %v1600 = vadd.f32 %v1551, %v1599
    %1601 = vmatmul.bf16.gmra.mxu0 %v346
    %v1602 = vpop.f32.mrf.mxu0
    %v1603 = vadd.f32 %v1554, %v1602
    %v1604 = vpop.f32.mrf.mxu0
    %v1605 = vadd.f32 %v1556, %v1604
    %1606 = vdwg.mxu0
    %1607 = vmatpush.bf16.msra.mxu0 %v794
    %1608 = vmatpush.bf16.msra.mxu0 %v790
    %1609 = vmatpush.bf16.msra.mxu0 %v786
    %1610 = vmatpush.bf16.msra.mxu0 %v782
    %1611 = vmatpush.bf16.msra.mxu0 %v778
    %1612 = vmatpush.bf16.msra.mxu0 %v774
    %1613 = vmatpush.bf16.msra.mxu0 %v770
    %1614 = vmatpush.bf16.msra.mxu0 %v766
    %1615 = vmatmul.bf16.gmra.mxu0 %v315
    %v1616 = vpop.f32.mrf.mxu0
    %v1617 = vadd.f32 %v214, %v1616
    %v1618 = vpop.f32.mrf.mxu0
    %v1619 = vadd.f32 %v214, %v1618
    %1620 = vmatmul.bf16.gmra.mxu0 %v319
    %v1621 = vpop.f32.mrf.mxu0
    %v1622 = vadd.f32 %v214, %v1621
    %v1623 = vpop.f32.mrf.mxu0
    %v1624 = vadd.f32 %v214, %v1623
    %1625 = vmatmul.bf16.gmra.mxu0 %v323
    %v1626 = vpop.f32.mrf.mxu0
    %v1627 = vadd.f32 %v214, %v1626
    %v1628 = vpop.f32.mrf.mxu0
    %v1629 = vadd.f32 %v214, %v1628
    %1630 = vmatmul.bf16.gmra.mxu0 %v327
    %v1631 = vpop.f32.mrf.mxu0
    %v1632 = vadd.f32 %v214, %v1631
    %v1633 = vpop.f32.mrf.mxu0
    %v1634 = vadd.f32 %v214, %v1633
    %1635 = vmatmul.bf16.gmra.mxu0 %v331
    %v1636 = vpop.f32.mrf.mxu0
    %v1637 = vadd.f32 %v214, %v1636
    %v1638 = vpop.f32.mrf.mxu0
    %v1639 = vadd.f32 %v214, %v1638
    %1640 = vmatmul.bf16.gmra.mxu0 %v335
    %v1641 = vpop.f32.mrf.mxu0
    %v1642 = vadd.f32 %v214, %v1641
    %v1643 = vpop.f32.mrf.mxu0
    %v1644 = vadd.f32 %v214, %v1643
    %1645 = vmatmul.bf16.gmra.mxu0 %v339
    %v1646 = vpop.f32.mrf.mxu0
    %v1647 = vadd.f32 %v214, %v1646
    %v1648 = vpop.f32.mrf.mxu0
    %v1649 = vadd.f32 %v214, %v1648
    %1650 = vmatmul.bf16.gmra.mxu0 %v343
    %v1651 = vpop.f32.mrf.mxu0
    %v1652 = vadd.f32 %v214, %v1651
    %v1653 = vpop.f32.mrf.mxu0
    %v1654 = vadd.f32 %v214, %v1653
    %1655 = vdwg.mxu0
    %1656 = vmatpush.bf16.msra.mxu0 %v826
    %1657 = vmatpush.bf16.msra.mxu0 %v822
    %1658 = vmatpush.bf16.msra.mxu0 %v818
    %1659 = vmatpush.bf16.msra.mxu0 %v814
    %1660 = vmatpush.bf16.msra.mxu0 %v810
    %1661 = vmatpush.bf16.msra.mxu0 %v806
    %1662 = vmatpush.bf16.msra.mxu0 %v802
    %1663 = vmatpush.bf16.msra.mxu0 %v798
    %1664 = vmatmul.bf16.gmra.mxu0 %v316
    %v1665 = vpop.f32.mrf.mxu0
    %v1666 = vadd.f32 %v1617, %v1665
    %v1667 = vpop.f32.mrf.mxu0
    %v1668 = vadd.f32 %v1619, %v1667
    %1669 = vmatmul.bf16.gmra.mxu0 %v320
    %v1670 = vpop.f32.mrf.mxu0
    %v1671 = vadd.f32 %v1622, %v1670
    %v1672 = vpop.f32.mrf.mxu0
    %v1673 = vadd.f32 %v1624, %v1672
    %1674 = vmatmul.bf16.gmra.mxu0 %v324
    %v1675 = vpop.f32.mrf.mxu0
    %v1676 = vadd.f32 %v1627, %v1675
    %v1677 = vpop.f32.mrf.mxu0
    %v1678 = vadd.f32 %v1629, %v1677
    %1679 = vmatmul.bf16.gmra.mxu0 %v328
    %v1680 = vpop.f32.mrf.mxu0
    %v1681 = vadd.f32 %v1632, %v1680
    %v1682 = vpop.f32.mrf.mxu0
    %v1683 = vadd.f32 %v1634, %v1682
    %1684 = vmatmul.bf16.gmra.mxu0 %v332
    %v1685 = vpop.f32.mrf.mxu0
    %v1686 = vadd.f32 %v1637, %v1685
    %v1687 = vpop.f32.mrf.mxu0
    %v1688 = vadd.f32 %v1639, %v1687
    %1689 = vmatmul.bf16.gmra.mxu0 %v336
    %v1690 = vpop.f32.mrf.mxu0
    %v1691 = vadd.f32 %v1642, %v1690
    %v1692 = vpop.f32.mrf.mxu0
    %v1693 = vadd.f32 %v1644, %v1692
    %1694 = vmatmul.bf16.gmra.mxu0 %v340
    %v1695 = vpop.f32.mrf.mxu0
    %v1696 = vadd.f32 %v1647, %v1695
    %v1697 = vpop.f32.mrf.mxu0
    %v1698 = vadd.f32 %v1649, %v1697
    %1699 = vmatmul.bf16.gmra.mxu0 %v344
    %v1700 = vpop.f32.mrf.mxu0
    %v1701 = vadd.f32 %v1652, %v1700
    %v1702 = vpop.f32.mrf.mxu0
    %v1703 = vadd.f32 %v1654, %v1702
    %1704 = vdwg.mxu0
    %1705 = vmatpush.bf16.msra.mxu0 %v858
    %1706 = vmatpush.bf16.msra.mxu0 %v854
    %1707 = vmatpush.bf16.msra.mxu0 %v850
    %1708 = vmatpush.bf16.msra.mxu0 %v846
    %1709 = vmatpush.bf16.msra.mxu0 %v842
    %1710 = vmatpush.bf16.msra.mxu0 %v838
    %1711 = vmatpush.bf16.msra.mxu0 %v834
    %1712 = vmatpush.bf16.msra.mxu0 %v830
    %1713 = vmatmul.bf16.gmra.mxu0 %v317
    %v1714 = vpop.f32.mrf.mxu0
    %v1715 = vadd.f32 %v1666, %v1714
    %v1716 = vpop.f32.mrf.mxu0
    %v1717 = vadd.f32 %v1668, %v1716
    %1718 = vmatmul.bf16.gmra.mxu0 %v321
    %v1719 = vpop.f32.mrf.mxu0
    %v1720 = vadd.f32 %v1671, %v1719
    %v1721 = vpop.f32.mrf.mxu0
    %v1722 = vadd.f32 %v1673, %v1721
    %1723 = vmatmul.bf16.gmra.mxu0 %v325
    %v1724 = vpop.f32.mrf.mxu0
    %v1725 = vadd.f32 %v1676, %v1724
    %v1726 = vpop.f32.mrf.mxu0
    %v1727 = vadd.f32 %v1678, %v1726
    %1728 = vmatmul.bf16.gmra.mxu0 %v329
    %v1729 = vpop.f32.mrf.mxu0
    %v1730 = vadd.f32 %v1681, %v1729
    %v1731 = vpop.f32.mrf.mxu0
    %v1732 = vadd.f32 %v1683, %v1731
    %1733 = vmatmul.bf16.gmra.mxu0 %v333
    %v1734 = vpop.f32.mrf.mxu0
    %v1735 = vadd.f32 %v1686, %v1734
    %v1736 = vpop.f32.mrf.mxu0
    %v1737 = vadd.f32 %v1688, %v1736
    %1738 = vmatmul.bf16.gmra.mxu0 %v337
    %v1739 = vpop.f32.mrf.mxu0
    %v1740 = vadd.f32 %v1691, %v1739
    %v1741 = vpop.f32.mrf.mxu0
    %v1742 = vadd.f32 %v1693, %v1741
    %1743 = vmatmul.bf16.gmra.mxu0 %v341
    %v1744 = vpop.f32.mrf.mxu0
    %v1745 = vadd.f32 %v1696, %v1744
    %v1746 = vpop.f32.mrf.mxu0
    %v1747 = vadd.f32 %v1698, %v1746
    %1748 = vmatmul.bf16.gmra.mxu0 %v345
    %v1749 = vpop.f32.mrf.mxu0
    %v1750 = vadd.f32 %v1701, %v1749
    %v1751 = vpop.f32.mrf.mxu0
    %v1752 = vadd.f32 %v1703, %v1751
    %1753 = vdwg.mxu0
    %1754 = vmatpush.bf16.msra.mxu0 %v890
    %1755 = vmatpush.bf16.msra.mxu0 %v886
    %1756 = vmatpush.bf16.msra.mxu0 %v882
    %1757 = vmatpush.bf16.msra.mxu0 %v878
    %1758 = vmatpush.bf16.msra.mxu0 %v874
    %1759 = vmatpush.bf16.msra.mxu0 %v870
    %1760 = vmatpush.bf16.msra.mxu0 %v866
    %1761 = vmatpush.bf16.msra.mxu0 %v862
    %1762 = vmatmul.bf16.gmra.mxu0 %v318
    %v1763 = vpop.f32.mrf.mxu0
    %v1764 = vadd.f32 %v1715, %v1763
    %v1765 = vpop.f32.mrf.mxu0
    %v1766 = vadd.f32 %v1717, %v1765
    %1767 = vmatmul.bf16.gmra.mxu0 %v322
    %v1768 = vpop.f32.mrf.mxu0
    %v1769 = vadd.f32 %v1720, %v1768
    %v1770 = vpop.f32.mrf.mxu0
    %v1771 = vadd.f32 %v1722, %v1770
    %1772 = vmatmul.bf16.gmra.mxu0 %v326
    %v1773 = vpop.f32.mrf.mxu0
    %v1774 = vadd.f32 %v1725, %v1773
    %v1775 = vpop.f32.mrf.mxu0
    %v1776 = vadd.f32 %v1727, %v1775
    %1777 = vmatmul.bf16.gmra.mxu0 %v330
    %v1778 = vpop.f32.mrf.mxu0
    %v1779 = vadd.f32 %v1730, %v1778
    %v1780 = vpop.f32.mrf.mxu0
    %v1781 = vadd.f32 %v1732, %v1780
    %1782 = vmatmul.bf16.gmra.mxu0 %v334
    %v1783 = vpop.f32.mrf.mxu0
    %v1784 = vadd.f32 %v1735, %v1783
    %v1785 = vpop.f32.mrf.mxu0
    %v1786 = vadd.f32 %v1737, %v1785
    %1787 = vmatmul.bf16.gmra.mxu0 %v338
    %v1788 = vpop.f32.mrf.mxu0
    %v1789 = vadd.f32 %v1740, %v1788
    %v1790 = vpop.f32.mrf.mxu0
    %v1791 = vadd.f32 %v1742, %v1790
    %1792 = vmatmul.bf16.gmra.mxu0 %v342
    %v1793 = vpop.f32.mrf.mxu0
    %v1794 = vadd.f32 %v1745, %v1793
    %v1795 = vpop.f32.mrf.mxu0
    %v1796 = vadd.f32 %v1747, %v1795
    %1797 = vmatmul.bf16.gmra.mxu0 %v346
    %v1798 = vpop.f32.mrf.mxu0
    %v1799 = vadd.f32 %v1750, %v1798
    %v1800 = vpop.f32.mrf.mxu0
    %v1801 = vadd.f32 %v1752, %v1800
    %1802 = vdwg.mxu0
    %1803 = vst [vmem:[#allocation2] sm:$0xff] %v1176
    %1804 = vst [vmem:[#allocation2 + $0x8] sm:$0xff] %v1372
    %1805 = vst [vmem:[#allocation2 + $0x10] sm:$0xff] %v1178
    %1806 = vst [vmem:[#allocation2 + $0x18] sm:$0xff] %v1374
    %1807 = vst [vmem:[#allocation2 + $0x20] sm:$0xff] %v1181
    %1808 = vst [vmem:[#allocation2 + $0x28] sm:$0xff] %v1377
    %1809 = vst [vmem:[#allocation2 + $0x30] sm:$0xff] %v1183
    %1810 = vst [vmem:[#allocation2 + $0x38] sm:$0xff] %v1379
    %1811 = vst [vmem:[#allocation2 + $0x40] sm:$0xff] %v1186
    %1812 = vst [vmem:[#allocation2 + $0x48] sm:$0xff] %v1382
    %1813 = vst [vmem:[#allocation2 + $0x50] sm:$0xff] %v1188
    %1814 = vst [vmem:[#allocation2 + $0x58] sm:$0xff] %v1384
    %1815 = vst [vmem:[#allocation2 + $0x60] sm:$0xff] %v1191
    %1816 = vst [vmem:[#allocation2 + $0x68] sm:$0xff] %v1387
    %1817 = vst [vmem:[#allocation2 + $0x70] sm:$0xff] %v1193
    %1818 = vst [vmem:[#allocation2 + $0x78] sm:$0xff] %v1389
    %1819 = vst [vmem:[#allocation2 + $0x80] sm:$0xff] %v1196
    %1820 = vst [vmem:[#allocation2 + $0x88] sm:$0xff] %v1392
    %1821 = vst [vmem:[#allocation2 + $0x90] sm:$0xff] %v1198
    %1822 = vst [vmem:[#allocation2 + $0x98] sm:$0xff] %v1394
    %1823 = vst [vmem:[#allocation2 + $0xa0] sm:$0xff] %v1201
    %1824 = vst [vmem:[#allocation2 + $0xa8] sm:$0xff] %v1397
    %1825 = vst [vmem:[#allocation2 + $0xb0] sm:$0xff] %v1203
    %1826 = vst [vmem:[#allocation2 + $0xb8] sm:$0xff] %v1399
    %1827 = vst [vmem:[#allocation2 + $0xc0] sm:$0xff] %v1206
    %1828 = vst [vmem:[#allocation2 + $0xc8] sm:$0xff] %v1402
    %1829 = vst [vmem:[#allocation2 + $0xd0] sm:$0xff] %v1208
    %1830 = vst [vmem:[#allocation2 + $0xd8] sm:$0xff] %v1404
    %1831 = vst [vmem:[#allocation2 + $0xe0] sm:$0xff] %v1211
    %1832 = vst [vmem:[#allocation2 + $0xe8] sm:$0xff] %v1407
    %1833 = vst [vmem:[#allocation2 + $0xf0] sm:$0xff] %v1213
    %1834 = vst [vmem:[#allocation2 + $0xf8] sm:$0xff] %v1409
    %1835 = vst [vmem:[#allocation3] sm:$0xff] %v1568
    %1836 = vst [vmem:[#allocation3 + $0x8] sm:$0xff] %v1764
    %1837 = vst [vmem:[#allocation3 + $0x10] sm:$0xff] %v1570
    %1838 = vst [vmem:[#allocation3 + $0x18] sm:$0xff] %v1766
    %1839 = vst [vmem:[#allocation3 + $0x20] sm:$0xff] %v1573
    %1840 = vst [vmem:[#allocation3 + $0x28] sm:$0xff] %v1769
    %1841 = vst [vmem:[#allocation3 + $0x30] sm:$0xff] %v1575
    %1842 = vst [vmem:[#allocation3 + $0x38] sm:$0xff] %v1771
    %1843 = vst [vmem:[#allocation3 + $0x40] sm:$0xff] %v1578
    %1844 = vst [vmem:[#allocation3 + $0x48] sm:$0xff] %v1774
    %1845 = vst [vmem:[#allocation3 + $0x50] sm:$0xff] %v1580
    %1846 = vst [vmem:[#allocation3 + $0x58] sm:$0xff] %v1776
    %1847 = vst [vmem:[#allocation3 + $0x60] sm:$0xff] %v1583
    %1848 = vst [vmem:[#allocation3 + $0x68] sm:$0xff] %v1779
    %1849 = vst [vmem:[#allocation3 + $0x70] sm:$0xff] %v1585
    %1850 = vst [vmem:[#allocation3 + $0x78] sm:$0xff] %v1781
    %1851 = vst [vmem:[#allocation3 + $0x80] sm:$0xff] %v1588
    %1852 = vst [vmem:[#allocation3 + $0x88] sm:$0xff] %v1784
    %1853 = vst [vmem:[#allocation3 + $0x90] sm:$0xff] %v1590
    %1854 = vst [vmem:[#allocation3 + $0x98] sm:$0xff] %v1786
    %1855 = vst [vmem:[#allocation3 + $0xa0] sm:$0xff] %v1593
    %1856 = vst [vmem:[#allocation3 + $0xa8] sm:$0xff] %v1789
    %1857 = vst [vmem:[#allocation3 + $0xb0] sm:$0xff] %v1595
    %1858 = vst [vmem:[#allocation3 + $0xb8] sm:$0xff] %v1791
    %1859 = vst [vmem:[#allocation3 + $0xc0] sm:$0xff] %v1598
    %1860 = vst [vmem:[#allocation3 + $0xc8] sm:$0xff] %v1794
    %1861 = vst [vmem:[#allocation3 + $0xd0] sm:$0xff] %v1600
    %1862 = vst [vmem:[#allocation3 + $0xd8] sm:$0xff] %v1796
    %1863 = vst [vmem:[#allocation3 + $0xe0] sm:$0xff] %v1603
    %1864 = vst [vmem:[#allocation3 + $0xe8] sm:$0xff] %v1799
    %1865 = vst [vmem:[#allocation3 + $0xf0] sm:$0xff] %v1605
    %1866 = vst [vmem:[#allocation3 + $0xf8] sm:$0xff] %v1801
    %v1867 = vld [vmem:[%s3] sm:$0xff]
    %v1868 = vld [vmem:[%s3 + $0x8] sm:$0xff]
    %v1869 = vld [vmem:[%s3 + $0x10] sm:$0xff]
    %v1870 = vld [vmem:[%s3 + $0x18] sm:$0xff]
    %v1871 = vld [vmem:[%s3 + $0x20] sm:$0xff]
    %v1872 = vld [vmem:[%s3 + $0x28] sm:$0xff]
    %v1873 = vld [vmem:[%s3 + $0x30] sm:$0xff]
    %v1874 = vld [vmem:[%s3 + $0x38] sm:$0xff]
    loop: start=0, step=1, limit=8
    $region42: #{model4_forward.1} parent=1 // loop_pre_header
      _
    $region43: #{model4_forward.1} parent=1 // loop_header
      %s1876 = sphi 0, %s1880
      %p1877 = scmp.ge.s32.totalorder %s1876, 8
      %v1881 = vphi 0.0, %v2066
      %v1882 = vphi 0.0, %v2067
      %v1883 = vphi 0.0, %v2062
      %v1884 = vphi 0.0, %v2063
    $region44: #{model4_forward.1} parent=1 // loop_header_branch
      %1879 = sbr.rel (%p1877) target = $region48
    $region45: #{model4_forward.1} parent=1 // loop_body
      %s1885 = smul.u32 %s1876, 4
      %s1886 = smul.addr %s1885, 8
      %s1887 = scalar_lea.vmem [#allocation2], %s1886
      %v1888 = vld [vmem:[%s1887] sm:$0xff]
      %v1889 = vld [vmem:[%s1887 + $0x8] sm:$0xff]
      %v1890 = vld [vmem:[%s1887 + $0x10] sm:$0xff]
      %v1891 = vld [vmem:[%s1887 + $0x18] sm:$0xff]
      %v1892 = vpack.c.bf16 %v1882, %v1881
      %1894 = vrot.lane.b32.xlu0 %v1892, 64
      %v1895 = vpop.permute.xlu0 %1894
      %v1904 = vunpack.c.l.b16 %v1867
      %v1905 = vunpack.c.h.b16 %v1867
      %v1906 = vunpack.c.l.b16 %v1868
      %v1907 = vunpack.c.h.b16 %v1868
      %v1908 = vunpack.c.l.b16 %v1869
      %v1909 = vunpack.c.h.b16 %v1869
      %v1910 = vunpack.c.l.b16 %v1870
      %v1911 = vunpack.c.h.b16 %v1870
      %v1912 = vunpack.c.l.b16 %v1871
      %v1913 = vunpack.c.h.b16 %v1871
      %v1914 = vunpack.c.l.b16 %v1872
      %v1915 = vunpack.c.h.b16 %v1872
      %v1916 = vunpack.c.l.b16 %v1873
      %v1917 = vunpack.c.h.b16 %v1873
      %v1918 = vunpack.c.l.b16 %v1874
      %v1919 = vunpack.c.h.b16 %v1874
      %v1920 = vpack.c.b16 %v1906, %v1904
      %v1921 = vpack.c.b16 %v1907, %v1905
      %v1922 = vpack.c.b16 %v1910, %v1908
      %v1923 = vpack.c.b16 %v1911, %v1909
      %v1924 = vpack.c.b16 %v1914, %v1912
      %v1925 = vpack.c.b16 %v1915, %v1913
      %v1926 = vpack.c.b16 %v1918, %v1916
      %v1927 = vpack.c.b16 %v1919, %v1917
      %vm1936 = vcmask 523264
      %v1938 = vsel %vm1936, %v1895, 0
      %1940 = vmatpush.bf16.msra.mxu0 0
      %1941 = vmatpush.bf16.msra.mxu0 0
      %1942 = vmatpush.bf16.msra.mxu0 0
      %1943 = vmatpush.bf16.msra.mxu0 0
      %1944 = vmatpush.bf16.msra.mxu0 %v1926
      %1945 = vmatpush.bf16.msra.mxu0 %v1924
      %1946 = vmatpush.bf16.msra.mxu0 %v1922
      %1947 = vmatpush.bf16.msra.mxu0 %v1920
      %1948 = vmatmul.bf16.gmra.mxu0 %v1938
      %v1949 = vpop.f32.mrf.mxu0
      %v1950 = vadd.f32 0.0, %v1949
      %v1951 = vpop.f32.mrf.mxu0
      %v1952 = vadd.f32 0.0, %v1951
      %1953 = vdwg.mxu0
      %1954 = vmatpush.bf16.msra.mxu0 0
      %1955 = vmatpush.bf16.msra.mxu0 0
      %1956 = vmatpush.bf16.msra.mxu0 0
      %1957 = vmatpush.bf16.msra.mxu0 0
      %1958 = vmatpush.bf16.msra.mxu0 %v1927
      %1959 = vmatpush.bf16.msra.mxu0 %v1925
      %1960 = vmatpush.bf16.msra.mxu0 %v1923
      %1961 = vmatpush.bf16.msra.mxu0 %v1921
      %1962 = vmatmul.bf16.gmra.mxu0 %v1938
      %v1963 = vpop.f32.mrf.mxu0
      %v1964 = vadd.f32 0.0, %v1963
      %v1965 = vpop.f32.mrf.mxu0
      %v1966 = vadd.f32 0.0, %v1965
      %1967 = vdwg.mxu0
      %v1968 = vadd.f32 %v1888, %v1950
      %v1969 = vadd.f32 %v1889, %v1964
      %v1970 = vadd.f32 %v1890, %v1952
      %v1971 = vadd.f32 %v1891, %v1966
      %v1972 = vsub.f32 0.0, %v1968
      %v1973 = vsub.f32 0.0, %v1970
      %v1974 = vmul.f32 %v1972, 1.442695
      %v1975 = vpow.pop %v1974
      %v1976 = vmul.f32 %v1973, 1.442695
      %v1977 = vpow.pop %v1976
      %v1978 = vadd.f32 %v1975, 1.0
      %v1979 = vadd.f32 %v1977, 1.0
      %v1980 = vrcp.pop %v1978
      %v1981 = vmul.f32 %v1978, %v1980
      %v1982 = vsub.f32 1.0, %v1981
      %v1983 = vmul.f32 %v1980, %v1982
      %v1984 = vadd.f32 %v1980, %v1983
      %vm1985 = vweird.f32 %v1978
      %vm1986 = vweird.f32 %v1980
      %vm1987 = vmor %vm1985, %vm1986
      %v1988 = vsel %vm1987, %v1980, %v1984
      %v1989 = vand.u32 2147483647, %v1978
      %vm1990 = vcmp.eq.f32.partialorder %v1989, 8.507059e+37
      %v1991 = vand.u32 %v1978, 2147483648
      %v1992 = vor.u32 1.1754944e-38, %v1991
      %v1993 = vsel %vm1990, %v1992, %v1988
      %v1994 = vmul.f32 1.0, %v1993
      %v1995 = vrcp.pop %v1979
      %v1996 = vmul.f32 %v1979, %v1995
      %v1997 = vsub.f32 1.0, %v1996
      %v1998 = vmul.f32 %v1995, %v1997
      %v1999 = vadd.f32 %v1995, %v1998
      %vm2000 = vweird.f32 %v1979
      %vm2001 = vweird.f32 %v1995
      %vm2002 = vmor %vm2000, %vm2001
      %v2003 = vsel %vm2002, %v1995, %v1999
      %v2004 = vand.u32 2147483647, %v1979
      %vm2005 = vcmp.eq.f32.partialorder %v2004, 8.507059e+37
      %v2006 = vand.u32 %v1979, 2147483648
      %v2007 = vor.u32 1.1754944e-38, %v2006
      %v2008 = vsel %vm2005, %v2007, %v2003
      %v2009 = vmul.f32 1.0, %v2008
      %v2010 = vtanh.pop %v1969
      %v2011 = vtanh.pop %v1971
      %v2012 = vsub.f32 0.0, %v1969
      %v2013 = vsub.f32 0.0, %v1971
      %v2014 = vmul.f32 %v2012, 1.442695
      %v2015 = vpow.pop %v2014
      %v2016 = vmul.f32 %v2013, 1.442695
      %v2017 = vpow.pop %v2016
      %v2018 = vadd.f32 %v2015, 1.0
      %v2019 = vadd.f32 %v2017, 1.0
      %v2020 = vrcp.pop %v2018
      %v2021 = vmul.f32 %v2018, %v2020
      %v2022 = vsub.f32 1.0, %v2021
      %v2023 = vmul.f32 %v2020, %v2022
      %v2024 = vadd.f32 %v2020, %v2023
      %vm2025 = vweird.f32 %v2018
      %vm2026 = vweird.f32 %v2020
      %vm2027 = vmor %vm2025, %vm2026
      %v2028 = vsel %vm2027, %v2020, %v2024
      %v2029 = vand.u32 2147483647, %v2018
      %vm2030 = vcmp.eq.f32.partialorder %v2029, 8.507059e+37
      %v2031 = vand.u32 %v2018, 2147483648
      %v2032 = vor.u32 1.1754944e-38, %v2031
      %v2033 = vsel %vm2030, %v2032, %v2028
      %v2034 = vmul.f32 1.0, %v2033
      %v2035 = vrcp.pop %v2019
      %v2036 = vmul.f32 %v2019, %v2035
      %v2037 = vsub.f32 1.0, %v2036
      %v2038 = vmul.f32 %v2035, %v2037
      %v2039 = vadd.f32 %v2035, %v2038
      %vm2040 = vweird.f32 %v2019
      %vm2041 = vweird.f32 %v2035
      %vm2042 = vmor %vm2040, %vm2041
      %v2043 = vsel %vm2042, %v2035, %v2039
      %v2044 = vand.u32 2147483647, %v2019
      %vm2045 = vcmp.eq.f32.partialorder %v2044, 8.507059e+37
      %v2046 = vand.u32 %v2019, 2147483648
      %v2047 = vor.u32 1.1754944e-38, %v2046
      %v2048 = vsel %vm2045, %v2047, %v2043
      %v2049 = vmul.f32 1.0, %v2048
      %v2050 = vmul.f32 %v1994, %v1883
      %v2051 = vmul.f32 %v2009, %v1884
      %v2052 = vmul.f32 %v1994, %v2010
      %v2053 = vmul.f32 %v2009, %v2011
      %2056 = vrot.lane.b32.xlu0 %v2052, 64
      %v2057 = vpop.permute.xlu0 %2056
      %2058 = vrot.lane.b32.xlu0 %v2053, 64
      %v2059 = vpop.permute.xlu0 %2058
      %v2062 = vadd.f32 %v2050, %v2057
      %v2063 = vadd.f32 %v2051, %v2059
      %v2064 = vtanh.pop %v2062
      %v2065 = vtanh.pop %v2063
      %v2066 = vmul.f32 %v2034, %v2064
      %v2067 = vmul.f32 %v2049, %v2065
      %2070 = vrot.lane.b32.xlu0 %v2066, 64
      %v2071 = vpop.permute.xlu0 %2070
      %2072 = vrot.lane.b32.xlu0 %v2067, 64
      %v2073 = vpop.permute.xlu0 %2072
      %s2076 = smul.u32 %s1876, 16
      %s2077 = scalar_lea.vmem [#allocation4], %s2076
      %2078 = vst.msk [vmem:[%s2077] sm:$0xff] %vm1936, %v2071
      %2079 = vst.msk [vmem:[%s2077 + $0x8] sm:$0xff] %vm1936, %v2073
    $region46: #{model4_forward.1} parent=1 // loop_footer
      %s1880 = sadd.s32 1, %s1876
    $region47: #{model4_forward.1} parent=1 // loop_footer_branch
      %1875 = sbr.rel target = $region43
    $region48: #{model4_forward.1} parent=1 // loop_exit
      _
    %v2080 = vld [vmem:[%s4] sm:$0xff]
    %v2081 = vld [vmem:[%s4 + $0x8] sm:$0xff]
    %v2082 = vld [vmem:[%s4 + $0x10] sm:$0xff]
    %v2083 = vld [vmem:[%s4 + $0x18] sm:$0xff]
    %v2084 = vld [vmem:[%s4 + $0x20] sm:$0xff]
    %v2085 = vld [vmem:[%s4 + $0x28] sm:$0xff]
    %v2086 = vld [vmem:[%s4 + $0x30] sm:$0xff]
    %v2087 = vld [vmem:[%s4 + $0x38] sm:$0xff]
    loop: start=0, step=1, limit=8
    $region49: #{model4_forward.1} parent=1 // loop_pre_header
      _
    $region50: #{model4_forward.1} parent=1 // loop_header
      %s2089 = sphi 0, %s2093
      %p2090 = scmp.ge.s32.totalorder %s2089, 8
      %v2094 = vphi 0.0, %v2280
      %v2095 = vphi 0.0, %v2281
      %v2096 = vphi 0.0, %v2276
      %v2097 = vphi 0.0, %v2277
    $region51: #{model4_forward.1} parent=1 // loop_header_branch
      %2092 = sbr.rel (%p2090) target = $region55
    $region52: #{model4_forward.1} parent=1 // loop_body
      %s2098 = ssub.s32 7, %s2089
      %s2099 = smul.u32 %s2098, 4
      %s2100 = smul.addr %s2099, 8
      %s2101 = scalar_lea.vmem [#allocation3], %s2100
      %v2102 = vld [vmem:[%s2101] sm:$0xff]
      %v2103 = vld [vmem:[%s2101 + $0x8] sm:$0xff]
      %v2104 = vld [vmem:[%s2101 + $0x10] sm:$0xff]
      %v2105 = vld [vmem:[%s2101 + $0x18] sm:$0xff]
      %v2106 = vpack.c.bf16 %v2095, %v2094
      %2108 = vrot.lane.b32.xlu0 %v2106, 64
      %v2109 = vpop.permute.xlu0 %2108
      %v2118 = vunpack.c.l.b16 %v2080
      %v2119 = vunpack.c.h.b16 %v2080
      %v2120 = vunpack.c.l.b16 %v2081
      %v2121 = vunpack.c.h.b16 %v2081
      %v2122 = vunpack.c.l.b16 %v2082
      %v2123 = vunpack.c.h.b16 %v2082
      %v2124 = vunpack.c.l.b16 %v2083
      %v2125 = vunpack.c.h.b16 %v2083
      %v2126 = vunpack.c.l.b16 %v2084
      %v2127 = vunpack.c.h.b16 %v2084
      %v2128 = vunpack.c.l.b16 %v2085
      %v2129 = vunpack.c.h.b16 %v2085
      %v2130 = vunpack.c.l.b16 %v2086
      %v2131 = vunpack.c.h.b16 %v2086
      %v2132 = vunpack.c.l.b16 %v2087
      %v2133 = vunpack.c.h.b16 %v2087
      %v2134 = vpack.c.b16 %v2120, %v2118
      %v2135 = vpack.c.b16 %v2121, %v2119
      %v2136 = vpack.c.b16 %v2124, %v2122
      %v2137 = vpack.c.b16 %v2125, %v2123
      %v2138 = vpack.c.b16 %v2128, %v2126
      %v2139 = vpack.c.b16 %v2129, %v2127
      %v2140 = vpack.c.b16 %v2132, %v2130
      %v2141 = vpack.c.b16 %v2133, %v2131
      %vm2150 = vcmask 523264
      %v2152 = vsel %vm2150, %v2109, 0
      %2154 = vmatpush.bf16.msra.mxu0 0
      %2155 = vmatpush.bf16.msra.mxu0 0
      %2156 = vmatpush.bf16.msra.mxu0 0
      %2157 = vmatpush.bf16.msra.mxu0 0
      %2158 = vmatpush.bf16.msra.mxu0 %v2140
      %2159 = vmatpush.bf16.msra.mxu0 %v2138
      %2160 = vmatpush.bf16.msra.mxu0 %v2136
      %2161 = vmatpush.bf16.msra.mxu0 %v2134
      %2162 = vmatmul.bf16.gmra.mxu0 %v2152
      %v2163 = vpop.f32.mrf.mxu0
      %v2164 = vadd.f32 0.0, %v2163
      %v2165 = vpop.f32.mrf.mxu0
      %v2166 = vadd.f32 0.0, %v2165
      %2167 = vdwg.mxu0
      %2168 = vmatpush.bf16.msra.mxu0 0
      %2169 = vmatpush.bf16.msra.mxu0 0
      %2170 = vmatpush.bf16.msra.mxu0 0
      %2171 = vmatpush.bf16.msra.mxu0 0
      %2172 = vmatpush.bf16.msra.mxu0 %v2141
      %2173 = vmatpush.bf16.msra.mxu0 %v2139
      %2174 = vmatpush.bf16.msra.mxu0 %v2137
      %2175 = vmatpush.bf16.msra.mxu0 %v2135
      %2176 = vmatmul.bf16.gmra.mxu0 %v2152
      %v2177 = vpop.f32.mrf.mxu0
      %v2178 = vadd.f32 0.0, %v2177
      %v2179 = vpop.f32.mrf.mxu0
      %v2180 = vadd.f32 0.0, %v2179
      %2181 = vdwg.mxu0
      %v2182 = vadd.f32 %v2102, %v2164
      %v2183 = vadd.f32 %v2103, %v2178
      %v2184 = vadd.f32 %v2104, %v2166
      %v2185 = vadd.f32 %v2105, %v2180
      %v2186 = vsub.f32 0.0, %v2182
      %v2187 = vsub.f32 0.0, %v2184
      %v2188 = vmul.f32 %v2186, 1.442695
      %v2189 = vpow.pop %v2188
      %v2190 = vmul.f32 %v2187, 1.442695
      %v2191 = vpow.pop %v2190
      %v2192 = vadd.f32 %v2189, 1.0
      %v2193 = vadd.f32 %v2191, 1.0
      %v2194 = vrcp.pop %v2192
      %v2195 = vmul.f32 %v2192, %v2194
      %v2196 = vsub.f32 1.0, %v2195
      %v2197 = vmul.f32 %v2194, %v2196
      %v2198 = vadd.f32 %v2194, %v2197
      %vm2199 = vweird.f32 %v2192
      %vm2200 = vweird.f32 %v2194
      %vm2201 = vmor %vm2199, %vm2200
      %v2202 = vsel %vm2201, %v2194, %v2198
      %v2203 = vand.u32 2147483647, %v2192
      %vm2204 = vcmp.eq.f32.partialorder %v2203, 8.507059e+37
      %v2205 = vand.u32 %v2192, 2147483648
      %v2206 = vor.u32 1.1754944e-38, %v2205
      %v2207 = vsel %vm2204, %v2206, %v2202
      %v2208 = vmul.f32 1.0, %v2207
      %v2209 = vrcp.pop %v2193
      %v2210 = vmul.f32 %v2193, %v2209
      %v2211 = vsub.f32 1.0, %v2210
      %v2212 = vmul.f32 %v2209, %v2211
      %v2213 = vadd.f32 %v2209, %v2212
      %vm2214 = vweird.f32 %v2193
      %vm2215 = vweird.f32 %v2209
      %vm2216 = vmor %vm2214, %vm2215
      %v2217 = vsel %vm2216, %v2209, %v2213
      %v2218 = vand.u32 2147483647, %v2193
      %vm2219 = vcmp.eq.f32.partialorder %v2218, 8.507059e+37
      %v2220 = vand.u32 %v2193, 2147483648
      %v2221 = vor.u32 1.1754944e-38, %v2220
      %v2222 = vsel %vm2219, %v2221, %v2217
      %v2223 = vmul.f32 1.0, %v2222
      %v2224 = vtanh.pop %v2183
      %v2225 = vtanh.pop %v2185
      %v2226 = vsub.f32 0.0, %v2183
      %v2227 = vsub.f32 0.0, %v2185
      %v2228 = vmul.f32 %v2226, 1.442695
      %v2229 = vpow.pop %v2228
      %v2230 = vmul.f32 %v2227, 1.442695
      %v2231 = vpow.pop %v2230
      %v2232 = vadd.f32 %v2229, 1.0
      %v2233 = vadd.f32 %v2231, 1.0
      %v2234 = vrcp.pop %v2232
      %v2235 = vmul.f32 %v2232, %v2234
      %v2236 = vsub.f32 1.0, %v2235
      %v2237 = vmul.f32 %v2234, %v2236
      %v2238 = vadd.f32 %v2234, %v2237
      %vm2239 = vweird.f32 %v2232
      %vm2240 = vweird.f32 %v2234
      %vm2241 = vmor %vm2239, %vm2240
      %v2242 = vsel %vm2241, %v2234, %v2238
      %v2243 = vand.u32 2147483647, %v2232
      %vm2244 = vcmp.eq.f32.partialorder %v2243, 8.507059e+37
      %v2245 = vand.u32 %v2232, 2147483648
      %v2246 = vor.u32 1.1754944e-38, %v2245
      %v2247 = vsel %vm2244, %v2246, %v2242
      %v2248 = vmul.f32 1.0, %v2247
      %v2249 = vrcp.pop %v2233
      %v2250 = vmul.f32 %v2233, %v2249
      %v2251 = vsub.f32 1.0, %v2250
      %v2252 = vmul.f32 %v2249, %v2251
      %v2253 = vadd.f32 %v2249, %v2252
      %vm2254 = vweird.f32 %v2233
      %vm2255 = vweird.f32 %v2249
      %vm2256 = vmor %vm2254, %vm2255
      %v2257 = vsel %vm2256, %v2249, %v2253
      %v2258 = vand.u32 2147483647, %v2233
      %vm2259 = vcmp.eq.f32.partialorder %v2258, 8.507059e+37
      %v2260 = vand.u32 %v2233, 2147483648
      %v2261 = vor.u32 1.1754944e-38, %v2260
      %v2262 = vsel %vm2259, %v2261, %v2257
      %v2263 = vmul.f32 1.0, %v2262
      %v2264 = vmul.f32 %v2208, %v2096
      %v2265 = vmul.f32 %v2223, %v2097
      %v2266 = vmul.f32 %v2208, %v2224
      %v2267 = vmul.f32 %v2223, %v2225
      %2270 = vrot.lane.b32.xlu0 %v2266, 64
      %v2271 = vpop.permute.xlu0 %2270
      %2272 = vrot.lane.b32.xlu0 %v2267, 64
      %v2273 = vpop.permute.xlu0 %2272
      %v2276 = vadd.f32 %v2264, %v2271
      %v2277 = vadd.f32 %v2265, %v2273
      %v2278 = vtanh.pop %v2276
      %v2279 = vtanh.pop %v2277
      %v2280 = vmul.f32 %v2248, %v2278
      %v2281 = vmul.f32 %v2263, %v2279
      %2284 = vrot.lane.b32.xlu0 %v2280, 64
      %v2285 = vpop.permute.xlu0 %2284
      %2286 = vrot.lane.b32.xlu0 %v2281, 64
      %v2287 = vpop.permute.xlu0 %2286
      %s2290 = smul.u32 %s2098, 16
      %s2291 = scalar_lea.vmem [#allocation5], %s2290
      %2292 = vst.msk [vmem:[%s2291] sm:$0xff] %vm2150, %v2285
      %2293 = vst.msk [vmem:[%s2291 + $0x8] sm:$0xff] %vm2150, %v2287
    $region53: #{model4_forward.1} parent=1 // loop_footer
      %s2093 = sadd.s32 1, %s2089
    $region54: #{model4_forward.1} parent=1 // loop_footer_branch
      %2088 = sbr.rel target = $region50
    $region55: #{model4_forward.1} parent=1 // loop_exit
      _
    %v2294 = vld [vmem:[#allocation4] sm:$0xff]
    %v2295 = vld [vmem:[#allocation4 + $0x8] sm:$0xff]
    %v2296 = vld [vmem:[#allocation4 + $0x10] sm:$0xff]
    %v2297 = vld [vmem:[#allocation4 + $0x18] sm:$0xff]
    %v2298 = vld [vmem:[#allocation4 + $0x20] sm:$0xff]
    %v2299 = vld [vmem:[#allocation4 + $0x28] sm:$0xff]
    %v2300 = vld [vmem:[#allocation4 + $0x30] sm:$0xff]
    %v2301 = vld [vmem:[#allocation4 + $0x38] sm:$0xff]
    %v2302 = vld [vmem:[#allocation4 + $0x40] sm:$0xff]
    %v2303 = vld [vmem:[#allocation4 + $0x48] sm:$0xff]
    %v2304 = vld [vmem:[#allocation4 + $0x50] sm:$0xff]
    %v2305 = vld [vmem:[#allocation4 + $0x58] sm:$0xff]
    %v2306 = vld [vmem:[#allocation4 + $0x60] sm:$0xff]
    %v2307 = vld [vmem:[#allocation4 + $0x68] sm:$0xff]
    %v2308 = vld [vmem:[#allocation4 + $0x70] sm:$0xff]
    %v2309 = vld [vmem:[#allocation4 + $0x78] sm:$0xff]
    %v2310 = vpack.c.bf16 %v2295, %v2294
    %v2311 = vpack.c.bf16 %v2297, %v2296
    %v2312 = vpack.c.bf16 %v2299, %v2298
    %v2313 = vpack.c.bf16 %v2301, %v2300
    %v2314 = vpack.c.bf16 %v2303, %v2302
    %v2315 = vpack.c.bf16 %v2305, %v2304
    %v2316 = vpack.c.bf16 %v2307, %v2306
    %v2317 = vpack.c.bf16 %v2309, %v2308
    %v2318 = vld [vmem:[#allocation5] sm:$0xff]
    %v2319 = vld [vmem:[#allocation5 + $0x8] sm:$0xff]
    %v2320 = vld [vmem:[#allocation5 + $0x10] sm:$0xff]
    %v2321 = vld [vmem:[#allocation5 + $0x18] sm:$0xff]
    %v2322 = vld [vmem:[#allocation5 + $0x20] sm:$0xff]
    %v2323 = vld [vmem:[#allocation5 + $0x28] sm:$0xff]
    %v2324 = vld [vmem:[#allocation5 + $0x30] sm:$0xff]
    %v2325 = vld [vmem:[#allocation5 + $0x38] sm:$0xff]
    %v2326 = vld [vmem:[#allocation5 + $0x40] sm:$0xff]
    %v2327 = vld [vmem:[#allocation5 + $0x48] sm:$0xff]
    %v2328 = vld [vmem:[#allocation5 + $0x50] sm:$0xff]
    %v2329 = vld [vmem:[#allocation5 + $0x58] sm:$0xff]
    %v2330 = vld [vmem:[#allocation5 + $0x60] sm:$0xff]
    %v2331 = vld [vmem:[#allocation5 + $0x68] sm:$0xff]
    %v2332 = vld [vmem:[#allocation5 + $0x70] sm:$0xff]
    %v2333 = vld [vmem:[#allocation5 + $0x78] sm:$0xff]
    %v2334 = vpack.c.bf16 %v2319, %v2318
    %v2335 = vpack.c.bf16 %v2321, %v2320
    %v2336 = vpack.c.bf16 %v2323, %v2322
    %v2337 = vpack.c.bf16 %v2325, %v2324
    %v2338 = vpack.c.bf16 %v2327, %v2326
    %v2339 = vpack.c.bf16 %v2329, %v2328
    %v2340 = vpack.c.bf16 %v2331, %v2330
    %v2341 = vpack.c.bf16 %v2333, %v2332
    %v2342 = vld [vmem:[%s5] sm:$0xf]
    %v2343 = vld [vmem:[%s5 + $0x4] sm:$0xf]
    %v2344 = vld [vmem:[%s5 + $0x8] sm:$0xf]
    %v2345 = vld [vmem:[%s5 + $0xc] sm:$0xf]
    %v2346 = vld [vmem:[%s5 + $0x10] sm:$0xf]
    %v2347 = vld [vmem:[%s5 + $0x14] sm:$0xf]
    %v2348 = vld [vmem:[%s5 + $0x18] sm:$0xf]
    %v2349 = vld [vmem:[%s5 + $0x1c] sm:$0xf]
    %v2350 = vld [vmem:[%s5 + $0x20] sm:$0xf]
    %v2351 = vld [vmem:[%s5 + $0x24] sm:$0xf]
    %v2352 = vld [vmem:[%s5 + $0x28] sm:$0xf]
    %v2353 = vld [vmem:[%s5 + $0x2c] sm:$0xf]
    %v2354 = vld [vmem:[%s5 + $0x30] sm:$0xf]
    %v2355 = vld [vmem:[%s5 + $0x34] sm:$0xf]
    %v2356 = vld [vmem:[%s5 + $0x38] sm:$0xf]
    %v2357 = vld [vmem:[%s5 + $0x3c] sm:$0xf]
    %v2366 = vunpack.c.l.b16 %v2350
    %v2367 = vunpack.c.l.b16 %v2351
    %v2368 = vunpack.c.l.b16 %v2352
    %v2369 = vunpack.c.l.b16 %v2353
    %v2370 = vunpack.c.l.b16 %v2354
    %v2371 = vunpack.c.l.b16 %v2355
    %v2372 = vunpack.c.l.b16 %v2356
    %v2373 = vunpack.c.l.b16 %v2357
    %v2374 = vpack.c.b16 %v2367, %v2366
    %v2375 = vpack.c.b16 %v2369, %v2368
    %v2376 = vpack.c.b16 %v2371, %v2370
    %v2377 = vpack.c.b16 %v2373, %v2372
    %vm2382 = vcmask 523264
    %v2384 = vsel %vm2382, %v2334, 0
    %v2387 = vsel %vm2382, %v2335, 0
    %v2390 = vsel %vm2382, %v2336, 0
    %v2393 = vsel %vm2382, %v2337, 0
    %v2396 = vsel %vm2382, %v2338, 0
    %v2399 = vsel %vm2382, %v2339, 0
    %v2402 = vsel %vm2382, %v2340, 0
    %v2405 = vsel %vm2382, %v2341, 0
    %2407 = vmatpush.bf16.msra.mxu0 0
    %2408 = vmatpush.bf16.msra.mxu0 0
    %2409 = vmatpush.bf16.msra.mxu0 0
    %2410 = vmatpush.bf16.msra.mxu0 0
    %2411 = vmatpush.bf16.msra.mxu0 %v2377
    %2412 = vmatpush.bf16.msra.mxu0 %v2376
    %2413 = vmatpush.bf16.msra.mxu0 %v2375
    %2414 = vmatpush.bf16.msra.mxu0 %v2374
    %2415 = vmatmul.bf16.gmra.mxu0 %v2384
    %v2416 = vpop.f32.mrf.mxu0
    %v2417 = vadd.f32 0.0, %v2416
    %v2418 = vpop.f32.mrf.mxu0
    %v2419 = vadd.f32 0.0, %v2418
    %2420 = vmatmul.bf16.gmra.mxu0 %v2387
    %v2421 = vpop.f32.mrf.mxu0
    %v2422 = vadd.f32 0.0, %v2421
    %v2423 = vpop.f32.mrf.mxu0
    %v2424 = vadd.f32 0.0, %v2423
    %2425 = vmatmul.bf16.gmra.mxu0 %v2390
    %v2426 = vpop.f32.mrf.mxu0
    %v2427 = vadd.f32 0.0, %v2426
    %v2428 = vpop.f32.mrf.mxu0
    %v2429 = vadd.f32 0.0, %v2428
    %2430 = vmatmul.bf16.gmra.mxu0 %v2393
    %v2431 = vpop.f32.mrf.mxu0
    %v2432 = vadd.f32 0.0, %v2431
    %v2433 = vpop.f32.mrf.mxu0
    %v2434 = vadd.f32 0.0, %v2433
    %2435 = vmatmul.bf16.gmra.mxu0 %v2396
    %v2436 = vpop.f32.mrf.mxu0
    %v2437 = vadd.f32 0.0, %v2436
    %v2438 = vpop.f32.mrf.mxu0
    %v2439 = vadd.f32 0.0, %v2438
    %2440 = vmatmul.bf16.gmra.mxu0 %v2399
    %v2441 = vpop.f32.mrf.mxu0
    %v2442 = vadd.f32 0.0, %v2441
    %v2443 = vpop.f32.mrf.mxu0
    %v2444 = vadd.f32 0.0, %v2443
    %2445 = vmatmul.bf16.gmra.mxu0 %v2402
    %v2446 = vpop.f32.mrf.mxu0
    %v2447 = vadd.f32 0.0, %v2446
    %v2448 = vpop.f32.mrf.mxu0
    %v2449 = vadd.f32 0.0, %v2448
    %2450 = vmatmul.bf16.gmra.mxu0 %v2405
    %v2451 = vpop.f32.mrf.mxu0
    %v2452 = vadd.f32 0.0, %v2451
    %v2453 = vpop.f32.mrf.mxu0
    %v2454 = vadd.f32 0.0, %v2453
    %2455 = vdwg.mxu0
    %v2464 = vunpack.c.l.b16 %v2342
    %v2465 = vunpack.c.l.b16 %v2343
    %v2466 = vunpack.c.l.b16 %v2344
    %v2467 = vunpack.c.l.b16 %v2345
    %v2468 = vunpack.c.l.b16 %v2346
    %v2469 = vunpack.c.l.b16 %v2347
    %v2470 = vunpack.c.l.b16 %v2348
    %v2471 = vunpack.c.l.b16 %v2349
    %v2472 = vpack.c.b16 %v2465, %v2464
    %v2473 = vpack.c.b16 %v2467, %v2466
    %v2474 = vpack.c.b16 %v2469, %v2468
    %v2475 = vpack.c.b16 %v2471, %v2470
    %v2481 = vsel %vm2382, %v2310, 0
    %v2484 = vsel %vm2382, %v2311, 0
    %v2487 = vsel %vm2382, %v2312, 0
    %v2490 = vsel %vm2382, %v2313, 0
    %v2493 = vsel %vm2382, %v2314, 0
    %v2496 = vsel %vm2382, %v2315, 0
    %v2499 = vsel %vm2382, %v2316, 0
    %v2502 = vsel %vm2382, %v2317, 0
    %2504 = vmatpush.bf16.msra.mxu0 0
    %2505 = vmatpush.bf16.msra.mxu0 0
    %2506 = vmatpush.bf16.msra.mxu0 0
    %2507 = vmatpush.bf16.msra.mxu0 0
    %2508 = vmatpush.bf16.msra.mxu0 %v2475
    %2509 = vmatpush.bf16.msra.mxu0 %v2474
    %2510 = vmatpush.bf16.msra.mxu0 %v2473
    %2511 = vmatpush.bf16.msra.mxu0 %v2472
    %2512 = vmatmul.bf16.gmra.mxu0 %v2481
    %v2513 = vpop.f32.mrf.mxu0
    %v2514 = vadd.f32 %v2417, %v2513
    %v2515 = vpop.f32.mrf.mxu0
    %v2516 = vadd.f32 %v2419, %v2515
    %2517 = vmatmul.bf16.gmra.mxu0 %v2484
    %v2518 = vpop.f32.mrf.mxu0
    %v2519 = vadd.f32 %v2422, %v2518
    %v2520 = vpop.f32.mrf.mxu0
    %v2521 = vadd.f32 %v2424, %v2520
    %2522 = vmatmul.bf16.gmra.mxu0 %v2487
    %v2523 = vpop.f32.mrf.mxu0
    %v2524 = vadd.f32 %v2427, %v2523
    %v2525 = vpop.f32.mrf.mxu0
    %v2526 = vadd.f32 %v2429, %v2525
    %2527 = vmatmul.bf16.gmra.mxu0 %v2490
    %v2528 = vpop.f32.mrf.mxu0
    %v2529 = vadd.f32 %v2432, %v2528
    %v2530 = vpop.f32.mrf.mxu0
    %v2531 = vadd.f32 %v2434, %v2530
    %2532 = vmatmul.bf16.gmra.mxu0 %v2493
    %v2533 = vpop.f32.mrf.mxu0
    %v2534 = vadd.f32 %v2437, %v2533
    %v2535 = vpop.f32.mrf.mxu0
    %v2536 = vadd.f32 %v2439, %v2535
    %2537 = vmatmul.bf16.gmra.mxu0 %v2496
    %v2538 = vpop.f32.mrf.mxu0
    %v2539 = vadd.f32 %v2442, %v2538
    %v2540 = vpop.f32.mrf.mxu0
    %v2541 = vadd.f32 %v2444, %v2540
    %2542 = vmatmul.bf16.gmra.mxu0 %v2499
    %v2543 = vpop.f32.mrf.mxu0
    %v2544 = vadd.f32 %v2447, %v2543
    %v2545 = vpop.f32.mrf.mxu0
    %v2546 = vadd.f32 %v2449, %v2545
    %2547 = vmatmul.bf16.gmra.mxu0 %v2502
    %v2548 = vpop.f32.mrf.mxu0
    %v2549 = vadd.f32 %v2452, %v2548
    %v2550 = vpop.f32.mrf.mxu0
    %v2551 = vadd.f32 %v2454, %v2550
    %2552 = vdwg.mxu0
    %v2553 = vld [vmem:[%s6] sm:$0x1]
    %v2555 = vperm.slane %v2553, 0
    %v2557 = vadd.f32 %v2514, %v2555
    %v2558 = vadd.f32 %v2516, %v2555
    %v2559 = vadd.f32 %v2519, %v2555
    %v2560 = vadd.f32 %v2521, %v2555
    %v2561 = vadd.f32 %v2524, %v2555
    %v2562 = vadd.f32 %v2526, %v2555
    %v2563 = vadd.f32 %v2529, %v2555
    %v2564 = vadd.f32 %v2531, %v2555
    %v2565 = vadd.f32 %v2534, %v2555
    %v2566 = vadd.f32 %v2536, %v2555
    %v2567 = vadd.f32 %v2539, %v2555
    %v2568 = vadd.f32 %v2541, %v2555
    %v2569 = vadd.f32 %v2544, %v2555
    %v2570 = vadd.f32 %v2546, %v2555
    %v2571 = vadd.f32 %v2549, %v2555
    %v2572 = vadd.f32 %v2551, %v2555
    %v2573 = vmax.f32 %v2557, 0.0
    %v2574 = vmax.f32 %v2558, 0.0
    %v2575 = vmax.f32 %v2559, 0.0
    %v2576 = vmax.f32 %v2560, 0.0
    %v2577 = vmax.f32 %v2561, 0.0
    %v2578 = vmax.f32 %v2562, 0.0
    %v2579 = vmax.f32 %v2563, 0.0
    %v2580 = vmax.f32 %v2564, 0.0
    %v2581 = vmax.f32 %v2565, 0.0
    %v2582 = vmax.f32 %v2566, 0.0
    %v2583 = vmax.f32 %v2567, 0.0
    %v2584 = vmax.f32 %v2568, 0.0
    %v2585 = vmax.f32 %v2569, 0.0
    %v2586 = vmax.f32 %v2570, 0.0
    %v2587 = vmax.f32 %v2571, 0.0
    %v2588 = vmax.f32 %v2572, 0.0
    %v2589 = vpack.c.bf16 %v2574, %v2573
    %v2590 = vpack.c.bf16 %v2576, %v2575
    %v2591 = vpack.c.bf16 %v2578, %v2577
    %v2592 = vpack.c.bf16 %v2580, %v2579
    %v2593 = vpack.c.bf16 %v2582, %v2581
    %v2594 = vpack.c.bf16 %v2584, %v2583
    %v2595 = vpack.c.bf16 %v2586, %v2585
    %v2596 = vpack.c.bf16 %v2588, %v2587
    %v2597 = vld [vmem:[%s7] sm:$0xf]
    %v2598 = vld [vmem:[%s7 + $0x4] sm:$0xf]
    %v2599 = vld [vmem:[%s7 + $0x8] sm:$0xf]
    %v2600 = vld [vmem:[%s7 + $0xc] sm:$0xf]
    %v2601 = vld [vmem:[%s7 + $0x10] sm:$0xf]
    %v2602 = vld [vmem:[%s7 + $0x14] sm:$0xf]
    %v2603 = vld [vmem:[%s7 + $0x18] sm:$0xf]
    %v2604 = vld [vmem:[%s7 + $0x1c] sm:$0xf]
    %v2605 = vld [vmem:[%s7 + $0x20] sm:$0xf]
    %v2606 = vld [vmem:[%s7 + $0x24] sm:$0xf]
    %v2607 = vld [vmem:[%s7 + $0x28] sm:$0xf]
    %v2608 = vld [vmem:[%s7 + $0x2c] sm:$0xf]
    %v2609 = vld [vmem:[%s7 + $0x30] sm:$0xf]
    %v2610 = vld [vmem:[%s7 + $0x34] sm:$0xf]
    %v2611 = vld [vmem:[%s7 + $0x38] sm:$0xf]
    %v2612 = vld [vmem:[%s7 + $0x3c] sm:$0xf]
    %v2613 = vld [vmem:[%s8] sm:$0x1]
    %v2615 = vperm.slane %v2613, 0
    %v2633 = vunpack.c.l.b16 %v2597
    %v2634 = vunpack.c.l.b16 %v2598
    %v2635 = vunpack.c.l.b16 %v2599
    %v2636 = vunpack.c.l.b16 %v2600
    %v2637 = vunpack.c.l.b16 %v2601
    %v2638 = vunpack.c.l.b16 %v2602
    %v2639 = vunpack.c.l.b16 %v2603
    %v2640 = vunpack.c.l.b16 %v2604
    %v2641 = vunpack.c.l.b16 %v2605
    %v2642 = vunpack.c.l.b16 %v2606
    %v2643 = vunpack.c.l.b16 %v2607
    %v2644 = vunpack.c.l.b16 %v2608
    %v2645 = vunpack.c.l.b16 %v2609
    %v2646 = vunpack.c.l.b16 %v2610
    %v2647 = vunpack.c.l.b16 %v2611
    %v2648 = vunpack.c.l.b16 %v2612
    %v2649 = vpack.c.b16 %v2634, %v2633
    %v2650 = vpack.c.b16 %v2636, %v2635
    %v2651 = vpack.c.b16 %v2638, %v2637
    %v2652 = vpack.c.b16 %v2640, %v2639
    %v2653 = vpack.c.b16 %v2642, %v2641
    %v2654 = vpack.c.b16 %v2644, %v2643
    %v2655 = vpack.c.b16 %v2646, %v2645
    %v2656 = vpack.c.b16 %v2648, %v2647
    %2665 = vmatpush.bf16.msra.mxu0 %v2656
    %2666 = vmatpush.bf16.msra.mxu0 %v2655
    %2667 = vmatpush.bf16.msra.mxu0 %v2654
    %2668 = vmatpush.bf16.msra.mxu0 %v2653
    %2669 = vmatpush.bf16.msra.mxu0 %v2652
    %2670 = vmatpush.bf16.msra.mxu0 %v2651
    %2671 = vmatpush.bf16.msra.mxu0 %v2650
    %2672 = vmatpush.bf16.msra.mxu0 %v2649
    %2673 = vmatmul.bf16.gmra.mxu0 %v2589
    %v2674 = vpop.f32.mrf.mxu0
    %v2675 = vadd.f32 %v2615, %v2674
    %v2676 = vpop.f32.mrf.mxu0
    %v2677 = vadd.f32 %v2615, %v2676
    %2678 = vmatmul.bf16.gmra.mxu0 %v2590
    %v2679 = vpop.f32.mrf.mxu0
    %v2680 = vadd.f32 %v2615, %v2679
    %v2681 = vpop.f32.mrf.mxu0
    %v2682 = vadd.f32 %v2615, %v2681
    %2683 = vmatmul.bf16.gmra.mxu0 %v2591
    %v2684 = vpop.f32.mrf.mxu0
    %v2685 = vadd.f32 %v2615, %v2684
    %v2686 = vpop.f32.mrf.mxu0
    %v2687 = vadd.f32 %v2615, %v2686
    %2688 = vmatmul.bf16.gmra.mxu0 %v2592
    %v2689 = vpop.f32.mrf.mxu0
    %v2690 = vadd.f32 %v2615, %v2689
    %v2691 = vpop.f32.mrf.mxu0
    %v2692 = vadd.f32 %v2615, %v2691
    %2693 = vmatmul.bf16.gmra.mxu0 %v2593
    %v2694 = vpop.f32.mrf.mxu0
    %v2695 = vadd.f32 %v2615, %v2694
    %v2696 = vpop.f32.mrf.mxu0
    %v2697 = vadd.f32 %v2615, %v2696
    %2698 = vmatmul.bf16.gmra.mxu0 %v2594
    %v2699 = vpop.f32.mrf.mxu0
    %v2700 = vadd.f32 %v2615, %v2699
    %v2701 = vpop.f32.mrf.mxu0
    %v2702 = vadd.f32 %v2615, %v2701
    %2703 = vmatmul.bf16.gmra.mxu0 %v2595
    %v2704 = vpop.f32.mrf.mxu0
    %v2705 = vadd.f32 %v2615, %v2704
    %v2706 = vpop.f32.mrf.mxu0
    %v2707 = vadd.f32 %v2615, %v2706
    %2708 = vmatmul.bf16.gmra.mxu0 %v2596
    %v2709 = vpop.f32.mrf.mxu0
    %v2710 = vadd.f32 %v2615, %v2709
    %v2711 = vpop.f32.mrf.mxu0
    %v2712 = vadd.f32 %v2615, %v2711
    %2713 = vdwg.mxu0
    %2714 = vst [vmem:[%s9] sm:$0xff] %v2675
    %2715 = vst [vmem:[%s9 + $0x8] sm:$0xff] %v2677
    %2716 = vst [vmem:[%s9 + $0x10] sm:$0xff] %v2680
    %2717 = vst [vmem:[%s9 + $0x18] sm:$0xff] %v2682
    %2718 = vst [vmem:[%s9 + $0x20] sm:$0xff] %v2685
    %2719 = vst [vmem:[%s9 + $0x28] sm:$0xff] %v2687
    %2720 = vst [vmem:[%s9 + $0x30] sm:$0xff] %v2690
    %2721 = vst [vmem:[%s9 + $0x38] sm:$0xff] %v2692
    %2722 = vst [vmem:[%s9 + $0x40] sm:$0xff] %v2695
    %2723 = vst [vmem:[%s9 + $0x48] sm:$0xff] %v2697
    %2724 = vst [vmem:[%s9 + $0x50] sm:$0xff] %v2700
    %2725 = vst [vmem:[%s9 + $0x58] sm:$0xff] %v2702
    %2726 = vst [vmem:[%s9 + $0x60] sm:$0xff] %v2705
    %2727 = vst [vmem:[%s9 + $0x68] sm:$0xff] %v2707
    %2728 = vst [vmem:[%s9 + $0x70] sm:$0xff] %v2710
    %2729 = vst [vmem:[%s9 + $0x78] sm:$0xff] %v2712
    // Predicated region
    $region56: #{model4_forward.1} parent=1 // pred_check
      _
    $region57: #{model4_forward.1} parent=1 // pred_check_branch
      %2731 = sbr.rel (0) target = $region59
    $region58: #{model4_forward.1} parent=1 // pred_region
      _
    $region59: #{model4_forward.1} parent=1 // pred_fallthru
      _
    // Predicated region
    $region60: #{model4_forward.1} parent=1 // pred_check
      _
    $region61: #{model4_forward.1} parent=1 // pred_check_branch
      %2733 = sbr.rel (0) target = $region63
    $region62: #{model4_forward.1} parent=1 // pred_region
      _
    $region63: #{model4_forward.1} parent=1 // pred_fallthru
      _
    %2734 = vsyncpa [#allocation7], 1

</llo_original>
